<compile_context>
chip_gen: v7x
topology: tpu7x:2x2x1
jax: 0.10.0
libtpu: 0.0.40
codegen_flags: <defaults>
</compile_context>

<pallas_src>
import functools
import math

import jax
import jax.numpy as jnp
from jax.experimental import pallas as pl
from jax.experimental.pallas import tpu as pltpu


# ---------------------------------------------------------------------------
# Kernel: one grid step == (batch b, q-tile qi, kv-tile ki)
# ---------------------------------------------------------------------------
def _flash_attention_kernel(x_q_ref, x_kv_ref, w_q_ref, w_k_ref, w_v_ref,
                            w_o_ref, b_o_ref, o_ref,
                            q_scr, k_scr, v_scr, m_scr, l_scr, acc_scr,
                            *, heads):
    """Shapes (per block):
       x_q_ref : (1, TQ, dim)      x_kv_ref: (1, TKV, dim)
       w_q/k/v : (H, dim, dh) bf16 (scale folded into w_q)
       w_o_ref : (H, dh, dim) bf16   b_o_ref : (1, dim) f32
       o_ref   : (1, TQ, dim)
       q_scr   : (H, TQ, dh)  bf16   k/v_scr : (H, TKV, dh) bf16
       m/l_scr : (H, TQ, 1)   f32    acc_scr : (H, TQ, dh)  f32
    """
    ki = pl.program_id(2)
    n_kv = pl.num_programs(2)

    # Streamed kv rows of x, cast once to bf16 for the MXU.
    x_kv = x_kv_ref[0].astype(jnp.bfloat16)                       # (TKV, dim)

    # ---- per-(b, q-tile) init: online-softmax state + Q projection --------
    @pl.when(ki == 0)
    def _init():
        m_scr[...] = jnp.full(m_scr.shape, -jnp.inf, dtype=m_scr.dtype)
        l_scr[...] = jnp.zeros(l_scr.shape, dtype=l_scr.dtype)
        acc_scr[...] = jnp.zeros(acc_scr.shape, dtype=acc_scr.dtype)
        x_q = x_q_ref[0].astype(jnp.bfloat16)                     # (TQ, dim)
        # Per-head full-contraction-depth matmuls written into a batched
        # (H, TQ, dh) scratch -- no sub-128-lane slicing or lane concatenate.
        for h in range(heads):
            q_scr[h] = jnp.dot(
                x_q, w_q_ref[h],
                preferred_element_type=jnp.float32).astype(jnp.bfloat16)

    # ---- K / V projection for this kv tile (written head-batched) ---------
    for h in range(heads):
        k_scr[h] = jnp.dot(
            x_kv, w_k_ref[h],
            preferred_element_type=jnp.float32).astype(jnp.bfloat16)
        v_scr[h] = jnp.dot(
            x_kv, w_v_ref[h],
            preferred_element_type=jnp.float32).astype(jnp.bfloat16)

    # ---- batched-heads online-softmax attention core -----------------------
    q = q_scr[...]                                                # (H, TQ, dh)
    k = k_scr[...]                                                # (H, TKV, dh)
    v = v_scr[...]
    s = jnp.einsum("hqd,hkd->hqk", q, k,
                   preferred_element_type=jnp.float32)            # (H, TQ, TKV)

    m_prev = m_scr[...]
    m_new = jnp.maximum(m_prev, jnp.max(s, axis=-1, keepdims=True))
    alpha = jnp.exp(m_prev - m_new)                               # f32 (EUP)
    p = jnp.exp(s - m_new)                                        # f32 (EUP)
    l_scr[...] = alpha * l_scr[...] + jnp.sum(p, axis=-1, keepdims=True)
    acc_scr[...] = alpha * acc_scr[...] + jnp.einsum(
        "hqk,hkd->hqd", p.astype(jnp.bfloat16), v,
        preferred_element_type=jnp.float32)
    m_scr[...] = m_new

    # ---- finalize: normalize + per-head output-projection accumulation ----
    @pl.when(ki == n_kv - 1)
    def _finalize():
        inv_l = pl.reciprocal(l_scr[...], approx=True)            # EUP vrcp
        out_h = (acc_scr[...] * inv_l).astype(jnp.bfloat16)       # (H, TQ, dh)
        y = None
        for h in range(heads):
            t = jnp.dot(out_h[h], w_o_ref[h],
                        preferred_element_type=jnp.float32)       # (TQ, dim)
            y = t if y is None else y + t
        y = y + b_o_ref[...].astype(jnp.float32)
        o_ref[0] = y.astype(o_ref.dtype)


def _pick_tile(n, candidates=(256, 128, 64, 32, 16, 8)):
    """Largest tile in `candidates` dividing n (sequence tiles, multiples of 8)."""
    for c in candidates:
        if c <= n and n % c == 0:
            return c
    return n


# ---------------------------------------------------------------------------
# Wrapper: full module forward (selfatt=True, eval mode)
# ---------------------------------------------------------------------------
def attention_forward(x, params, heads, dim_head, *, q_tile=None, kv_tile=None):
    B, N, dim = x.shape
    inner_dim = heads * dim_head
    scale = dim_head ** (-0.5)

    w_qkv = params["w_qkv"]          # (dim, 3*inner_dim)  (nn.Linear weight^T)
    w_out = params["w_out"]          # (inner_dim, dim)
    b_out = params["b_out"]          # (1, dim)

    # One-time host-side weight relayout (genuinely free: constant transform):
    #   per-head slabs, softmax scale folded into Q weights, bf16 MXU operands.
    wq = (w_qkv[:, :inner_dim] * scale).reshape(dim, heads, dim_head)
    wk = w_qkv[:, inner_dim:2 * inner_dim].reshape(dim, heads, dim_head)
    wv = w_qkv[:, 2 * inner_dim:].reshape(dim, heads, dim_head)
    wq = jnp.transpose(wq, (1, 0, 2)).astype(jnp.bfloat16)        # (H, dim, dh)
    wk = jnp.transpose(wk, (1, 0, 2)).astype(jnp.bfloat16)
    wv = jnp.transpose(wv, (1, 0, 2)).astype(jnp.bfloat16)
    wo = w_out.reshape(heads, dim_head, dim).astype(jnp.bfloat16)  # (H, dh, dim)
    bo = b_out.astype(jnp.float32)                                 # (1, dim)

    tq = q_tile or _pick_tile(N)
    tkv = kv_tile or _pick_tile(N)
    assert N % tq == 0 and N % tkv == 0, "sequence length must divide the tiles"
    grid = (B, N // tq, N // tkv)

    # VMEM budget (double-buffered streams + resident weights + scratch).
    bpe = 4
    vmem_est = (
        2 * tq * dim * bpe + 2 * tkv * dim * bpe + 2 * tq * dim * bpe      # x / out tiles
        + 2 * (3 * heads * dim * dim_head + heads * dim_head * dim) * 2    # bf16 weights
        + dim * bpe                                                         # bias
        + 2 * heads * tq * dim_head + 2 * 2 * heads * tkv * dim_head        # q/k/v scratch
        + heads * tq * dim_head * bpe                                        # acc
        + 2 * heads * tq * 128 * bpe                                         # m/l (lane-padded)
    )
    vmem_limit = int(min(max(2 * vmem_est, 32 * 1024 * 1024), 64 * 1024 * 1024))

    flops = (2 * B * N * dim * inner_dim                       # Q projection
             + 2 * B * N * dim * 2 * inner_dim * (N // tq)     # K/V proj (recomputed per q-tile)
             + 4 * B * N * N * inner_dim                       # QK^T + P@V
             + 2 * B * N * inner_dim * dim)                    # output projection
    bytes_accessed = (x.size * bpe * (1 + N // tq)             # x read for q and per-q-tile kv
                      + 2 * (wq.size + wk.size + wv.size + wo.size)
                      + bo.size * bpe + B * N * dim * bpe)
    cost = pl.CostEstimate(flops=int(flops),
                           transcendentals=int(B * heads * N * N),
                           bytes_accessed=int(bytes_accessed))

    kernel = functools.partial(_flash_attention_kernel, heads=heads)

    return pl.pallas_call(
        kernel,
        out_shape=jax.ShapeDtypeStruct((B, N, dim), x.dtype),
        grid=grid,
        in_specs=[
            pl.BlockSpec((1, tq, dim), lambda b, qi, ki: (b, qi, 0)),     # x (q rows)
            pl.BlockSpec((1, tkv, dim), lambda b, qi, ki: (b, ki, 0)),    # x (kv rows)
            pl.BlockSpec((heads, dim, dim_head), lambda b, qi, ki: (0, 0, 0)),  # wq resident
            pl.BlockSpec((heads, dim, dim_head), lambda b, qi, ki: (0, 0, 0)),  # wk resident
            pl.BlockSpec((heads, dim, dim_head), lambda b, qi, ki: (0, 0, 0)),  # wv resident
            pl.BlockSpec((heads, dim_head, dim), lambda b, qi, ki: (0, 0, 0)),  # wo resident
            pl.BlockSpec((1, dim), lambda b, qi, ki: (0, 0)),                   # bias resident
        ],
        out_specs=pl.BlockSpec((1, tq, dim), lambda b, qi, ki: (b, qi, 0)),
        scratch_shapes=[
            pltpu.VMEM((heads, tq, dim_head), jnp.bfloat16),   # q
            pltpu.VMEM((heads, tkv, dim_head), jnp.bfloat16),  # k
            pltpu.VMEM((heads, tkv, dim_head), jnp.bfloat16),  # v
            pltpu.VMEM((heads, tq, 1), jnp.float32),           # m (running max)
            pltpu.VMEM((heads, tq, 1), jnp.float32),           # l (running sum)
            pltpu.VMEM((heads, tq, dim_head), jnp.float32),    # acc
        ],
        compiler_params=pltpu.CompilerParams(
            dimension_semantics=("parallel", "parallel", "arbitrary"),
            vmem_limit_bytes=vmem_limit,
        ),
        cost_estimate=cost,
    )(x, x, wq, wk, wv, wo, bo)


# ---------------------------------------------------------------------------
# Pure-JAX f32 reference for correctness check
# ---------------------------------------------------------------------------
def attention_reference(x, params, heads, dim_head):
    B, N, dim = x.shape
    inner_dim = heads * dim_head
    scale = dim_head ** (-0.5)
    qkv = x @ params["w_qkv"]
    q, k, v = jnp.split(qkv, 3, axis=-1)
    split = lambda t: t.reshape(B, N, heads, dim_head).transpose(0, 2, 1, 3)
    q, k, v = split(q), split(k), split(v)
    dots = jnp.einsum("bhnd,bhmd->bhnm", q, k) * scale
    attn = jax.nn.softmax(dots, axis=-1)
    out = jnp.einsum("bhnm,bhmd->bhnd", attn, v)
    out = out.transpose(0, 2, 1, 3).reshape(B, N, inner_dim)
    return out @ params["w_out"] + params["b_out"]


# ---------------------------------------------------------------------------
# Main
# ---------------------------------------------------------------------------
if __name__ == "__main__":
    # Small shapes consistent with the module.
    B, N, dim = 2, 8, 32
    heads, dim_head = 4, 16
    inner_dim = heads * dim_head

    key = jax.random.PRNGKey(0)
    k_x, k_qkv, k_out_w, k_out_b = jax.random.split(key, 4)

    x = jax.random.normal(k_x, (B, N, dim), dtype=jnp.float32)

    # PyTorch-Linear-like uniform init; weights stored transposed (in, out).
    bnd_qkv = 1.0 / math.sqrt(dim)
    w_qkv = jax.random.uniform(k_qkv, (dim, 3 * inner_dim), jnp.float32,
                               minval=-bnd_qkv, maxval=bnd_qkv)
    bnd_out = 1.0 / math.sqrt(inner_dim)
    w_out = jax.random.uniform(k_out_w, (inner_dim, dim), jnp.float32,
                               minval=-bnd_out, maxval=bnd_out)
    b_out = jax.random.uniform(k_out_b, (1, dim), jnp.float32,
                               minval=-bnd_out, maxval=bnd_out)

    params = {"w_qkv": w_qkv, "w_out": w_out, "b_out": b_out}

    y = attention_forward(x, params, heads, dim_head)
    y = jax.block_until_ready(y)

    y_ref = attention_reference(x, params, heads, dim_head)
    assert y.shape == (B, N, dim)
    # bf16 MXU operands + approx reciprocal -> bf16-appropriate tolerance.
    assert jnp.allclose(y, y_ref, atol=3e-2, rtol=3e-2), "mismatch vs reference"

    print("KERNEL_OK")
</pallas_src>

<mosaic_0001>
module attributes {stable_mosaic.version = 11 : i64} {
  func.func @_flash_attention_kernel(%arg0: i32, %arg1: i32, %arg2: i32, %arg3: memref<1x8x32xf32, #tpu.memory_space<vmem>>, %arg4: memref<1x8x32xf32, #tpu.memory_space<vmem>>, %arg5: memref<4x32x16xbf16, #tpu.memory_space<vmem>>, %arg6: memref<4x32x16xbf16, #tpu.memory_space<vmem>>, %arg7: memref<4x32x16xbf16, #tpu.memory_space<vmem>>, %arg8: memref<4x16x32xbf16, #tpu.memory_space<vmem>>, %arg9: memref<1x32xf32, #tpu.memory_space<vmem>>, %arg10: memref<1x8x32xf32, #tpu.memory_space<vmem>>, %arg11: memref<4x8x16xbf16, #tpu.memory_space<vmem>>, %arg12: memref<4x8x16xbf16, #tpu.memory_space<vmem>>, %arg13: memref<4x8x16xbf16, #tpu.memory_space<vmem>>, %arg14: memref<4x8x1xf32, #tpu.memory_space<vmem>>, %arg15: memref<4x8x1xf32, #tpu.memory_space<vmem>>, %arg16: memref<4x8x16xf32, #tpu.memory_space<vmem>>) attributes {dimension_semantics = [#tpu.dimension_semantics<parallel>, #tpu.dimension_semantics<parallel>, #tpu.dimension_semantics<arbitrary>], iteration_bounds = array<i64: 2, 1, 1>, scalar_prefetch = 0 : i64, scratch_operands = 6 : i64, tpu.core_type = #tpu.core_type<tc>, window_params = [{transform_indices = @transform_0, window_bounds = array<i64: 1, 8, 32>}, {transform_indices = @transform_1, window_bounds = array<i64: 1, 8, 32>}, {pipeline_mode = #tpu.pipeline_mode<synchronous>, transform_indices = @transform_2, window_bounds = array<i64: 4, 32, 16>}, {pipeline_mode = #tpu.pipeline_mode<synchronous>, transform_indices = @transform_3, window_bounds = array<i64: 4, 32, 16>}, {pipeline_mode = #tpu.pipeline_mode<synchronous>, transform_indices = @transform_4, window_bounds = array<i64: 4, 32, 16>}, {pipeline_mode = #tpu.pipeline_mode<synchronous>, transform_indices = @transform_5, window_bounds = array<i64: 4, 16, 32>}, {pipeline_mode = #tpu.pipeline_mode<synchronous>, transform_indices = @transform_6, window_bounds = array<i64: 1, 32>}, {transform_indices = @transform_7, window_bounds = array<i64: 1, 8, 32>}]} {
    %c0 = arith.constant 0 : index
    %c0_0 = arith.constant 0 : index
    %c0_1 = arith.constant 0 : index
    %0 = vector.load %arg4[%c0, %c0_0, %c0_1] : memref<1x8x32xf32, #tpu.memory_space<vmem>>, vector<1x8x32xf32>
    %1 = vector.shape_cast %0 : vector<1x8x32xf32> to vector<8x32xf32>
    %2 = arith.truncf %1 : vector<8x32xf32> to vector<8x32xbf16>
    %c0_i32 = arith.constant 0 : i32
    %3 = arith.cmpi eq, %arg2, %c0_i32 : i32
    %4 = arith.extui %3 : i1 to i32
    %c0_i32_2 = arith.constant 0 : i32
    %5 = arith.cmpi ne, %4, %c0_i32_2 : i32
    scf.if %5 {
      %cst_88 = arith.constant 0xFF800000 : f32
      %92 = vector.broadcast %cst_88 : f32 to vector<4x8x1xf32>
      %c0_89 = arith.constant 0 : index
      %c0_90 = arith.constant 0 : index
      %c0_91 = arith.constant 0 : index
      %93 = vector.load %arg14[%c0_89, %c0_90, %c0_91] : memref<4x8x1xf32, #tpu.memory_space<vmem>>, vector<4x8x1xf32>
      tpu.vector_store %arg14[%c0_89, %c0_90, %c0_91], %92 {strides = array<i32>} : memref<4x8x1xf32, #tpu.memory_space<vmem>>, vector<4x8x1xf32>,
      %cst_92 = arith.constant 0.000000e+00 : f32
      %94 = vector.broadcast %cst_92 : f32 to vector<4x8x1xf32>
      %c0_93 = arith.constant 0 : index
      %c0_94 = arith.constant 0 : index
      %c0_95 = arith.constant 0 : index
      %95 = vector.load %arg15[%c0_93, %c0_94, %c0_95] : memref<4x8x1xf32, #tpu.memory_space<vmem>>, vector<4x8x1xf32>
      tpu.vector_store %arg15[%c0_93, %c0_94, %c0_95], %94 {strides = array<i32>} : memref<4x8x1xf32, #tpu.memory_space<vmem>>, vector<4x8x1xf32>,
      %cst_96 = arith.constant 0.000000e+00 : f32
      %96 = vector.broadcast %cst_96 : f32 to vector<4x8x16xf32>
      %c0_97 = arith.constant 0 : index
      %c0_98 = arith.constant 0 : index
      %c0_99 = arith.constant 0 : index
      %97 = vector.load %arg16[%c0_97, %c0_98, %c0_99] : memref<4x8x16xf32, #tpu.memory_space<vmem>>, vector<4x8x16xf32>
      tpu.vector_store %arg16[%c0_97, %c0_98, %c0_99], %96 {strides = array<i32>} : memref<4x8x16xf32, #tpu.memory_space<vmem>>, vector<4x8x16xf32>,
      %c0_100 = arith.constant 0 : index
      %c0_101 = arith.constant 0 : index
      %c0_102 = arith.constant 0 : index
      %98 = vector.load %arg3[%c0_100, %c0_101, %c0_102] : memref<1x8x32xf32, #tpu.memory_space<vmem>>, vector<1x8x32xf32>
      %99 = vector.shape_cast %98 : vector<1x8x32xf32> to vector<8x32xf32>
      %100 = arith.truncf %99 : vector<8x32xf32> to vector<8x32xbf16>
      %c0_103 = arith.constant 0 : index
      %c0_104 = arith.constant 0 : index
      %c0_105 = arith.constant 0 : index
      %101 = vector.load %arg5[%c0_103, %c0_104, %c0_105] : memref<4x32x16xbf16, #tpu.memory_space<vmem>>, vector<1x32x16xbf16>
      %102 = vector.shape_cast %101 : vector<1x32x16xbf16> to vector<32x16xbf16>
      %cst_106 = arith.constant dense<0.000000e+00> : vector<8x16xf32>
      %103 = tpu.matmul %100, %102, %cst_106 {dimension_numbers = #tpu.dot_dimension_numbers<[1], [0], [0], [1], [0, 0, 1, 1], [], []>} : vector<8x32xbf16>, vector<32x16xbf16>, vector<8x16xf32> -> vector<8x16xf32>
      %104 = arith.truncf %103 : vector<8x16xf32> to vector<8x16xbf16>
      %c0_107 = arith.constant 0 : index
      %c0_108 = arith.constant 0 : index
      %c0_109 = arith.constant 0 : index
      %105 = vector.load %arg11[%c0_107, %c0_108, %c0_109] : memref<4x8x16xbf16, #tpu.memory_space<vmem>>, vector<1x8x16xbf16>
      %106 = vector.shape_cast %105 : vector<1x8x16xbf16> to vector<8x16xbf16>
      %107 = vector.shape_cast %104 : vector<8x16xbf16> to vector<1x8x16xbf16>
      tpu.vector_store %arg11[%c0_107, %c0_108, %c0_109], %107 {strides = array<i32>} : memref<4x8x16xbf16, #tpu.memory_space<vmem>>, vector<1x8x16xbf16>,
      %c1_110 = arith.constant 1 : index
      %c0_111 = arith.constant 0 : index
      %c0_112 = arith.constant 0 : index
      %108 = vector.load %arg5[%c1_110, %c0_111, %c0_112] : memref<4x32x16xbf16, #tpu.memory_space<vmem>>, vector<1x32x16xbf16>
      %109 = vector.shape_cast %108 : vector<1x32x16xbf16> to vector<32x16xbf16>
      %cst_113 = arith.constant dense<0.000000e+00> : vector<8x16xf32>
      %110 = tpu.matmul %100, %109, %cst_113 {dimension_numbers = #tpu.dot_dimension_numbers<[1], [0], [0], [1], [0, 0, 1, 1], [], []>} : vector<8x32xbf16>, vector<32x16xbf16>, vector<8x16xf32> -> vector<8x16xf32>
      %111 = arith.truncf %110 : vector<8x16xf32> to vector<8x16xbf16>
      %c1_114 = arith.constant 1 : index
      %c0_115 = arith.constant 0 : index
      %c0_116 = arith.constant 0 : index
      %112 = vector.load %arg11[%c1_114, %c0_115, %c0_116] : memref<4x8x16xbf16, #tpu.memory_space<vmem>>, vector<1x8x16xbf16>
      %113 = vector.shape_cast %112 : vector<1x8x16xbf16> to vector<8x16xbf16>
      %114 = vector.shape_cast %111 : vector<8x16xbf16> to vector<1x8x16xbf16>
      tpu.vector_store %arg11[%c1_114, %c0_115, %c0_116], %114 {strides = array<i32>} : memref<4x8x16xbf16, #tpu.memory_space<vmem>>, vector<1x8x16xbf16>,
      %c2_117 = arith.constant 2 : index
      %c0_118 = arith.constant 0 : index
      %c0_119 = arith.constant 0 : index
      %115 = vector.load %arg5[%c2_117, %c0_118, %c0_119] : memref<4x32x16xbf16, #tpu.memory_space<vmem>>, vector<1x32x16xbf16>
      %116 = vector.shape_cast %115 : vector<1x32x16xbf16> to vector<32x16xbf16>
      %cst_120 = arith.constant dense<0.000000e+00> : vector<8x16xf32>
      %117 = tpu.matmul %100, %116, %cst_120 {dimension_numbers = #tpu.dot_dimension_numbers<[1], [0], [0], [1], [0, 0, 1, 1], [], []>} : vector<8x32xbf16>, vector<32x16xbf16>, vector<8x16xf32> -> vector<8x16xf32>
      %118 = arith.truncf %117 : vector<8x16xf32> to vector<8x16xbf16>
      %c2_121 = arith.constant 2 : index
      %c0_122 = arith.constant 0 : index
      %c0_123 = arith.constant 0 : index
      %119 = vector.load %arg11[%c2_121, %c0_122, %c0_123] : memref<4x8x16xbf16, #tpu.memory_space<vmem>>, vector<1x8x16xbf16>
      %120 = vector.shape_cast %119 : vector<1x8x16xbf16> to vector<8x16xbf16>
      %121 = vector.shape_cast %118 : vector<8x16xbf16> to vector<1x8x16xbf16>
      tpu.vector_store %arg11[%c2_121, %c0_122, %c0_123], %121 {strides = array<i32>} : memref<4x8x16xbf16, #tpu.memory_space<vmem>>, vector<1x8x16xbf16>,
      %c3_124 = arith.constant 3 : index
      %c0_125 = arith.constant 0 : index
      %c0_126 = arith.constant 0 : index
      %122 = vector.load %arg5[%c3_124, %c0_125, %c0_126] : memref<4x32x16xbf16, #tpu.memory_space<vmem>>, vector<1x32x16xbf16>
      %123 = vector.shape_cast %122 : vector<1x32x16xbf16> to vector<32x16xbf16>
      %cst_127 = arith.constant dense<0.000000e+00> : vector<8x16xf32>
      %124 = tpu.matmul %100, %123, %cst_127 {dimension_numbers = #tpu.dot_dimension_numbers<[1], [0], [0], [1], [0, 0, 1, 1], [], []>} : vector<8x32xbf16>, vector<32x16xbf16>, vector<8x16xf32> -> vector<8x16xf32>
      %125 = arith.truncf %124 : vector<8x16xf32> to vector<8x16xbf16>
      %c3_128 = arith.constant 3 : index
      %c0_129 = arith.constant 0 : index
      %c0_130 = arith.constant 0 : index
      %126 = vector.load %arg11[%c3_128, %c0_129, %c0_130] : memref<4x8x16xbf16, #tpu.memory_space<vmem>>, vector<1x8x16xbf16>
      %127 = vector.shape_cast %126 : vector<1x8x16xbf16> to vector<8x16xbf16>
      %128 = vector.shape_cast %125 : vector<8x16xbf16> to vector<1x8x16xbf16>
      tpu.vector_store %arg11[%c3_128, %c0_129, %c0_130], %128 {strides = array<i32>} : memref<4x8x16xbf16, #tpu.memory_space<vmem>>, vector<1x8x16xbf16>,
    } else {
    }
    %c0_3 = arith.constant 0 : index
    %c0_4 = arith.constant 0 : index
    %c0_5 = arith.constant 0 : index
    %6 = vector.load %arg6[%c0_3, %c0_4, %c0_5] : memref<4x32x16xbf16, #tpu.memory_space<vmem>>, vector<1x32x16xbf16>
    %7 = vector.shape_cast %6 : vector<1x32x16xbf16> to vector<32x16xbf16>
    %cst = arith.constant dense<0.000000e+00> : vector<8x16xf32>
    %8 = tpu.matmul %2, %7, %cst {dimension_numbers = #tpu.dot_dimension_numbers<[1], [0], [0], [1], [0, 0, 1, 1], [], []>} : vector<8x32xbf16>, vector<32x16xbf16>, vector<8x16xf32> -> vector<8x16xf32>
    %9 = arith.truncf %8 : vector<8x16xf32> to vector<8x16xbf16>
    %c0_6 = arith.constant 0 : index
    %c0_7 = arith.constant 0 : index
    %c0_8 = arith.constant 0 : index
    %10 = vector.load %arg12[%c0_6, %c0_7, %c0_8] : memref<4x8x16xbf16, #tpu.memory_space<vmem>>, vector<1x8x16xbf16>
    %11 = vector.shape_cast %10 : vector<1x8x16xbf16> to vector<8x16xbf16>
    %12 = vector.shape_cast %9 : vector<8x16xbf16> to vector<1x8x16xbf16>
    tpu.vector_store %arg12[%c0_6, %c0_7, %c0_8], %12 {strides = array<i32>} : memref<4x8x16xbf16, #tpu.memory_space<vmem>>, vector<1x8x16xbf16>,
    %c0_9 = arith.constant 0 : index
    %c0_10 = arith.constant 0 : index
    %c0_11 = arith.constant 0 : index
    %13 = vector.load %arg7[%c0_9, %c0_10, %c0_11] : memref<4x32x16xbf16, #tpu.memory_space<vmem>>, vector<1x32x16xbf16>
    %14 = vector.shape_cast %13 : vector<1x32x16xbf16> to vector<32x16xbf16>
    %cst_12 = arith.constant dense<0.000000e+00> : vector<8x16xf32>
    %15 = tpu.matmul %2, %14, %cst_12 {dimension_numbers = #tpu.dot_dimension_numbers<[1], [0], [0], [1], [0, 0, 1, 1], [], []>} : vector<8x32xbf16>, vector<32x16xbf16>, vector<8x16xf32> -> vector<8x16xf32>
    %16 = arith.truncf %15 : vector<8x16xf32> to vector<8x16xbf16>
    %c0_13 = arith.constant 0 : index
    %c0_14 = arith.constant 0 : index
    %c0_15 = arith.constant 0 : index
    %17 = vector.load %arg13[%c0_13, %c0_14, %c0_15] : memref<4x8x16xbf16, #tpu.memory_space<vmem>>, vector<1x8x16xbf16>
    %18 = vector.shape_cast %17 : vector<1x8x16xbf16> to vector<8x16xbf16>
    %19 = vector.shape_cast %16 : vector<8x16xbf16> to vector<1x8x16xbf16>
    tpu.vector_store %arg13[%c0_13, %c0_14, %c0_15], %19 {strides = array<i32>} : memref<4x8x16xbf16, #tpu.memory_space<vmem>>, vector<1x8x16xbf16>,
    %c1 = arith.constant 1 : index
    %c0_16 = arith.constant 0 : index
    %c0_17 = arith.constant 0 : index
    %20 = vector.load %arg6[%c1, %c0_16, %c0_17] : memref<4x32x16xbf16, #tpu.memory_space<vmem>>, vector<1x32x16xbf16>
    %21 = vector.shape_cast %20 : vector<1x32x16xbf16> to vector<32x16xbf16>
    %cst_18 = arith.constant dense<0.000000e+00> : vector<8x16xf32>
    %22 = tpu.matmul %2, %21, %cst_18 {dimension_numbers = #tpu.dot_dimension_numbers<[1], [0], [0], [1], [0, 0, 1, 1], [], []>} : vector<8x32xbf16>, vector<32x16xbf16>, vector<8x16xf32> -> vector<8x16xf32>
    %23 = arith.truncf %22 : vector<8x16xf32> to vector<8x16xbf16>
    %c1_19 = arith.constant 1 : index
    %c0_20 = arith.constant 0 : index
    %c0_21 = arith.constant 0 : index
    %24 = vector.load %arg12[%c1_19, %c0_20, %c0_21] : memref<4x8x16xbf16, #tpu.memory_space<vmem>>, vector<1x8x16xbf16>
    %25 = vector.shape_cast %24 : vector<1x8x16xbf16> to vector<8x16xbf16>
    %26 = vector.shape_cast %23 : vector<8x16xbf16> to vector<1x8x16xbf16>
    tpu.vector_store %arg12[%c1_19, %c0_20, %c0_21], %26 {strides = array<i32>} : memref<4x8x16xbf16, #tpu.memory_space<vmem>>, vector<1x8x16xbf16>,
    %c1_22 = arith.constant 1 : index
    %c0_23 = arith.constant 0 : index
    %c0_24 = arith.constant 0 : index
    %27 = vector.load %arg7[%c1_22, %c0_23, %c0_24] : memref<4x32x16xbf16, #tpu.memory_space<vmem>>, vector<1x32x16xbf16>
    %28 = vector.shape_cast %27 : vector<1x32x16xbf16> to vector<32x16xbf16>
    %cst_25 = arith.constant dense<0.000000e+00> : vector<8x16xf32>
    %29 = tpu.matmul %2, %28, %cst_25 {dimension_numbers = #tpu.dot_dimension_numbers<[1], [0], [0], [1], [0, 0, 1, 1], [], []>} : vector<8x32xbf16>, vector<32x16xbf16>, vector<8x16xf32> -> vector<8x16xf32>
    %30 = arith.truncf %29 : vector<8x16xf32> to vector<8x16xbf16>
    %c1_26 = arith.constant 1 : index
    %c0_27 = arith.constant 0 : index
    %c0_28 = arith.constant 0 : index
    %31 = vector.load %arg13[%c1_26, %c0_27, %c0_28] : memref<4x8x16xbf16, #tpu.memory_space<vmem>>, vector<1x8x16xbf16>
    %32 = vector.shape_cast %31 : vector<1x8x16xbf16> to vector<8x16xbf16>
    %33 = vector.shape_cast %30 : vector<8x16xbf16> to vector<1x8x16xbf16>
    tpu.vector_store %arg13[%c1_26, %c0_27, %c0_28], %33 {strides = array<i32>} : memref<4x8x16xbf16, #tpu.memory_space<vmem>>, vector<1x8x16xbf16>,
    %c2 = arith.constant 2 : index
    %c0_29 = arith.constant 0 : index
    %c0_30 = arith.constant 0 : index
    %34 = vector.load %arg6[%c2, %c0_29, %c0_30] : memref<4x32x16xbf16, #tpu.memory_space<vmem>>, vector<1x32x16xbf16>
    %35 = vector.shape_cast %34 : vector<1x32x16xbf16> to vector<32x16xbf16>
    %cst_31 = arith.constant dense<0.000000e+00> : vector<8x16xf32>
    %36 = tpu.matmul %2, %35, %cst_31 {dimension_numbers = #tpu.dot_dimension_numbers<[1], [0], [0], [1], [0, 0, 1, 1], [], []>} : vector<8x32xbf16>, vector<32x16xbf16>, vector<8x16xf32> -> vector<8x16xf32>
    %37 = arith.truncf %36 : vector<8x16xf32> to vector<8x16xbf16>
    %c2_32 = arith.constant 2 : index
    %c0_33 = arith.constant 0 : index
    %c0_34 = arith.constant 0 : index
    %38 = vector.load %arg12[%c2_32, %c0_33, %c0_34] : memref<4x8x16xbf16, #tpu.memory_space<vmem>>, vector<1x8x16xbf16>
    %39 = vector.shape_cast %38 : vector<1x8x16xbf16> to vector<8x16xbf16>
    %40 = vector.shape_cast %37 : vector<8x16xbf16> to vector<1x8x16xbf16>
    tpu.vector_store %arg12[%c2_32, %c0_33, %c0_34], %40 {strides = array<i32>} : memref<4x8x16xbf16, #tpu.memory_space<vmem>>, vector<1x8x16xbf16>,
    %c2_35 = arith.constant 2 : index
    %c0_36 = arith.constant 0 : index
    %c0_37 = arith.constant 0 : index
    %41 = vector.load %arg7[%c2_35, %c0_36, %c0_37] : memref<4x32x16xbf16, #tpu.memory_space<vmem>>, vector<1x32x16xbf16>
    %42 = vector.shape_cast %41 : vector<1x32x16xbf16> to vector<32x16xbf16>
    %cst_38 = arith.constant dense<0.000000e+00> : vector<8x16xf32>
    %43 = tpu.matmul %2, %42, %cst_38 {dimension_numbers = #tpu.dot_dimension_numbers<[1], [0], [0], [1], [0, 0, 1, 1], [], []>} : vector<8x32xbf16>, vector<32x16xbf16>, vector<8x16xf32> -> vector<8x16xf32>
    %44 = arith.truncf %43 : vector<8x16xf32> to vector<8x16xbf16>
    %c2_39 = arith.constant 2 : index
    %c0_40 = arith.constant 0 : index
    %c0_41 = arith.constant 0 : index
    %45 = vector.load %arg13[%c2_39, %c0_40, %c0_41] : memref<4x8x16xbf16, #tpu.memory_space<vmem>>, vector<1x8x16xbf16>
    %46 = vector.shape_cast %45 : vector<1x8x16xbf16> to vector<8x16xbf16>
    %47 = vector.shape_cast %44 : vector<8x16xbf16> to vector<1x8x16xbf16>
    tpu.vector_store %arg13[%c2_39, %c0_40, %c0_41], %47 {strides = array<i32>} : memref<4x8x16xbf16, #tpu.memory_space<vmem>>, vector<1x8x16xbf16>,
    %c3 = arith.constant 3 : index
    %c0_42 = arith.constant 0 : index
    %c0_43 = arith.constant 0 : index
    %48 = vector.load %arg6[%c3, %c0_42, %c0_43] : memref<4x32x16xbf16, #tpu.memory_space<vmem>>, vector<1x32x16xbf16>
    %49 = vector.shape_cast %48 : vector<1x32x16xbf16> to vector<32x16xbf16>
    %cst_44 = arith.constant dense<0.000000e+00> : vector<8x16xf32>
    %50 = tpu.matmul %2, %49, %cst_44 {dimension_numbers = #tpu.dot_dimension_numbers<[1], [0], [0], [1], [0, 0, 1, 1], [], []>} : vector<8x32xbf16>, vector<32x16xbf16>, vector<8x16xf32> -> vector<8x16xf32>
    %51 = arith.truncf %50 : vector<8x16xf32> to vector<8x16xbf16>
    %c3_45 = arith.constant 3 : index
    %c0_46 = arith.constant 0 : index
    %c0_47 = arith.constant 0 : index
    %52 = vector.load %arg12[%c3_45, %c0_46, %c0_47] : memref<4x8x16xbf16, #tpu.memory_space<vmem>>, vector<1x8x16xbf16>
    %53 = vector.shape_cast %52 : vector<1x8x16xbf16> to vector<8x16xbf16>
    %54 = vector.shape_cast %51 : vector<8x16xbf16> to vector<1x8x16xbf16>
    tpu.vector_store %arg12[%c3_45, %c0_46, %c0_47], %54 {strides = array<i32>} : memref<4x8x16xbf16, #tpu.memory_space<vmem>>, vector<1x8x16xbf16>,
    %c3_48 = arith.constant 3 : index
    %c0_49 = arith.constant 0 : index
    %c0_50 = arith.constant 0 : index
    %55 = vector.load %arg7[%c3_48, %c0_49, %c0_50] : memref<4x32x16xbf16, #tpu.memory_space<vmem>>, vector<1x32x16xbf16>
    %56 = vector.shape_cast %55 : vector<1x32x16xbf16> to vector<32x16xbf16>
    %cst_51 = arith.constant dense<0.000000e+00> : vector<8x16xf32>
    %57 = tpu.matmul %2, %56, %cst_51 {dimension_numbers = #tpu.dot_dimension_numbers<[1], [0], [0], [1], [0, 0, 1, 1], [], []>} : vector<8x32xbf16>, vector<32x16xbf16>, vector<8x16xf32> -> vector<8x16xf32>
    %58 = arith.truncf %57 : vector<8x16xf32> to vector<8x16xbf16>
    %c3_52 = arith.constant 3 : index
    %c0_53 = arith.constant 0 : index
    %c0_54 = arith.constant 0 : index
    %59 = vector.load %arg13[%c3_52, %c0_53, %c0_54] : memref<4x8x16xbf16, #tpu.memory_space<vmem>>, vector<1x8x16xbf16>
    %60 = vector.shape_cast %59 : vector<1x8x16xbf16> to vector<8x16xbf16>
    %61 = vector.shape_cast %58 : vector<8x16xbf16> to vector<1x8x16xbf16>
    tpu.vector_store %arg13[%c3_52, %c0_53, %c0_54], %61 {strides = array<i32>} : memref<4x8x16xbf16, #tpu.memory_space<vmem>>, vector<1x8x16xbf16>,
    %c0_55 = arith.constant 0 : index
    %c0_56 = arith.constant 0 : index
    %c0_57 = arith.constant 0 : index
    %62 = vector.load %arg11[%c0_55, %c0_56, %c0_57] : memref<4x8x16xbf16, #tpu.memory_space<vmem>>, vector<4x8x16xbf16>
    %c0_58 = arith.constant 0 : index
    %c0_59 = arith.constant 0 : index
    %c0_60 = arith.constant 0 : index
    %63 = vector.load %arg12[%c0_58, %c0_59, %c0_60] : memref<4x8x16xbf16, #tpu.memory_space<vmem>>, vector<4x8x16xbf16>
    %c0_61 = arith.constant 0 : index
    %c0_62 = arith.constant 0 : index
    %c0_63 = arith.constant 0 : index
    %64 = vector.load %arg13[%c0_61, %c0_62, %c0_63] : memref<4x8x16xbf16, #tpu.memory_space<vmem>>, vector<4x8x16xbf16>
    "tpu.trace_start"() <{level = 10 : i32, message = "hqd,hkd->hqk"}> : () -> ()
    %cst_64 = arith.constant dense<0.000000e+00> : vector<4x8x8xf32>
    %65 = tpu.matmul %62, %63, %cst_64 {dimension_numbers = #tpu.dot_dimension_numbers<[2], [2], [1], [1], [0, 0, 0, 1, 1, 1], [0], [0]>} : vector<4x8x16xbf16>, vector<4x8x16xbf16>, vector<4x8x8xf32> -> vector<4x8x8xf32>
    "tpu.trace_stop"() : () -> ()
    %c0_65 = arith.constant 0 : index
    %c0_66 = arith.constant 0 : index
    %c0_67 = arith.constant 0 : index
    %66 = vector.load %arg14[%c0_65, %c0_66, %c0_67] : memref<4x8x1xf32, #tpu.memory_space<vmem>>, vector<4x8x1xf32>
    %cst_68 = arith.constant dense<0xFF800000> : vector<4x8xf32>
    %67 = vector.multi_reduction <maximumf>, %65, %cst_68 [2] : vector<4x8x8xf32> to vector<4x8xf32>
    %68 = vector.shape_cast %67 : vector<4x8xf32> to vector<4x8x1xf32>
    %69 = arith.maximumf %66, %68 : vector<4x8x1xf32>
    %70 = arith.subf %66, %69 : vector<4x8x1xf32>
    %71 = math.exp %70 : vector<4x8x1xf32>
    %72 = vector.broadcast %69 : vector<4x8x1xf32> to vector<4x8x8xf32>
    %73 = arith.subf %65, %72 : vector<4x8x8xf32>
    %74 = math.exp %73 : vector<4x8x8xf32>
    %c0_69 = arith.constant 0 : index
    %c0_70 = arith.constant 0 : index
    %c0_71 = arith.constant 0 : index
    %75 = vector.load %arg15[%c0_69, %c0_70, %c0_71] : memref<4x8x1xf32, #tpu.memory_space<vmem>>, vector<4x8x1xf32>
    %76 = arith.mulf %71, %75 : vector<4x8x1xf32>
    %cst_72 = arith.constant dense<0.000000e+00> : vector<4x8xf32>
    %77 = vector.multi_reduction <add>, %74, %cst_72 [2] : vector<4x8x8xf32> to vector<4x8xf32>
    %78 = vector.shape_cast %77 : vector<4x8xf32> to vector<4x8x1xf32>
    %79 = arith.addf %76, %78 : vector<4x8x1xf32>
    %c0_73 = arith.constant 0 : index
    %c0_74 = arith.constant 0 : index
    %c0_75 = arith.constant 0 : index
    %80 = vector.load %arg15[%c0_73, %c0_74, %c0_75] : memref<4x8x1xf32, #tpu.memory_space<vmem>>, vector<4x8x1xf32>
    tpu.vector_store %arg15[%c0_73, %c0_74, %c0_75], %79 {strides = array<i32>} : memref<4x8x1xf32, #tpu.memory_space<vmem>>, vector<4x8x1xf32>,
    %c0_76 = arith.constant 0 : index
    %c0_77 = arith.constant 0 : index
    %c0_78 = arith.constant 0 : index
    %81 = vector.load %arg16[%c0_76, %c0_77, %c0_78] : memref<4x8x16xf32, #tpu.memory_space<vmem>>, vector<4x8x16xf32>
    %82 = vector.broadcast %71 : vector<4x8x1xf32> to vector<4x8x16xf32>
    %83 = arith.mulf %82, %81 : vector<4x8x16xf32>
    %84 = arith.truncf %74 : vector<4x8x8xf32> to vector<4x8x8xbf16>
    "tpu.trace_start"() <{level = 10 : i32, message = "hqk,hkd->hqd"}> : () -> ()
    %cst_79 = arith.constant dense<0.000000e+00> : vector<4x8x16xf32>
    %85 = tpu.matmul %84, %64, %cst_79 {dimension_numbers = #tpu.dot_dimension_numbers<[2], [1], [1], [2], [0, 0, 0, 1, 1, 2], [0], [0]>} : vector<4x8x8xbf16>, vector<4x8x16xbf16>, vector<4x8x16xf32> -> vector<4x8x16xf32>
    "tpu.trace_stop"() : () -> ()
    %86 = arith.addf %83, %85 : vector<4x8x16xf32>
    %c0_80 = arith.constant 0 : index
    %c0_81 = arith.constant 0 : index
    %c0_82 = arith.constant 0 : index
    %87 = vector.load %arg16[%c0_80, %c0_81, %c0_82] : memref<4x8x16xf32, #tpu.memory_space<vmem>>, vector<4x8x16xf32>
    tpu.vector_store %arg16[%c0_80, %c0_81, %c0_82], %86 {strides = array<i32>} : memref<4x8x16xf32, #tpu.memory_space<vmem>>, vector<4x8x16xf32>,
    %c0_83 = arith.constant 0 : index
    %c0_84 = arith.constant 0 : index
    %c0_85 = arith.constant 0 : index
    %88 = vector.load %arg14[%c0_83, %c0_84, %c0_85] : memref<4x8x1xf32, #tpu.memory_space<vmem>>, vector<4x8x1xf32>
    tpu.vector_store %arg14[%c0_83, %c0_84, %c0_85], %69 {strides = array<i32>} : memref<4x8x1xf32, #tpu.memory_space<vmem>>, vector<4x8x1xf32>,
    %c0_i32_86 = arith.constant 0 : i32
    %89 = arith.cmpi eq, %arg2, %c0_i32_86 : i32
    %90 = arith.extui %89 : i1 to i32
    %c0_i32_87 = arith.constant 0 : i32
    %91 = arith.cmpi ne, %90, %c0_i32_87 : i32
    scf.if %91 {
      %c0_88 = arith.constant 0 : index
      %c0_89 = arith.constant 0 : index
      %c0_90 = arith.constant 0 : index
      %92 = vector.load %arg15[%c0_88, %c0_89, %c0_90] : memref<4x8x1xf32, #tpu.memory_space<vmem>>, vector<4x8x1xf32>
      %93 = tpu.reciprocal %92 {approx = true} : vector<4x8x1xf32> -> vector<4x8x1xf32>
      %c0_91 = arith.constant 0 : index
      %c0_92 = arith.constant 0 : index
      %c0_93 = arith.constant 0 : index
      %94 = vector.load %arg16[%c0_91, %c0_92, %c0_93] : memref<4x8x16xf32, #tpu.memory_space<vmem>>, vector<4x8x16xf32>
      %95 = vector.broadcast %93 : vector<4x8x1xf32> to vector<4x8x16xf32>
      %96 = arith.mulf %94, %95 : vector<4x8x16xf32>
      %97 = arith.truncf %96 : vector<4x8x16xf32> to vector<4x8x16xbf16>
      %98 = vector.extract_strided_slice %97 {offsets = [0, 0, 0], sizes = [1, 8, 16], strides = [1, 1, 1]} : vector<4x8x16xbf16> to vector<1x8x16xbf16>
      %99 = vector.shape_cast %98 : vector<1x8x16xbf16> to vector<8x16xbf16>
      %c0_94 = arith.constant 0 : index
      %c0_95 = arith.constant 0 : index
      %c0_96 = arith.constant 0 : index
      %100 = vector.load %arg8[%c0_94, %c0_95, %c0_96] : memref<4x16x32xbf16, #tpu.memory_space<vmem>>, vector<1x16x32xbf16>
      %101 = vector.shape_cast %100 : vector<1x16x32xbf16> to vector<16x32xbf16>
      %cst_97 = arith.constant dense<0.000000e+00> : vector<8x32xf32>
      %102 = tpu.matmul %99, %101, %cst_97 {dimension_numbers = #tpu.dot_dimension_numbers<[1], [0], [0], [1], [0, 0, 1, 1], [], []>} : vector<8x16xbf16>, vector<16x32xbf16>, vector<8x32xf32> -> vector<8x32xf32>
      %103 = vector.extract_strided_slice %97 {offsets = [1, 0, 0], sizes = [1, 8, 16], strides = [1, 1, 1]} : vector<4x8x16xbf16> to vector<1x8x16xbf16>
      %104 = vector.shape_cast %103 : vector<1x8x16xbf16> to vector<8x16xbf16>
      %c1_98 = arith.constant 1 : index
      %c0_99 = arith.constant 0 : index
      %c0_100 = arith.constant 0 : index
      %105 = vector.load %arg8[%c1_98, %c0_99, %c0_100] : memref<4x16x32xbf16, #tpu.memory_space<vmem>>, vector<1x16x32xbf16>
      %106 = vector.shape_cast %105 : vector<1x16x32xbf16> to vector<16x32xbf16>
      %cst_101 = arith.constant dense<0.000000e+00> : vector<8x32xf32>
      %107 = tpu.matmul %104, %106, %cst_101 {dimension_numbers = #tpu.dot_dimension_numbers<[1], [0], [0], [1], [0, 0, 1, 1], [], []>} : vector<8x16xbf16>, vector<16x32xbf16>, vector<8x32xf32> -> vector<8x32xf32>
      %108 = arith.addf %102, %107 : vector<8x32xf32>
      %109 = vector.extract_strided_slice %97 {offsets = [2, 0, 0], sizes = [1, 8, 16], strides = [1, 1, 1]} : vector<4x8x16xbf16> to vector<1x8x16xbf16>
      %110 = vector.shape_cast %109 : vector<1x8x16xbf16> to vector<8x16xbf16>
      %c2_102 = arith.constant 2 : index
      %c0_103 = arith.constant 0 : index
      %c0_104 = arith.constant 0 : index
      %111 = vector.load %arg8[%c2_102, %c0_103, %c0_104] : memref<4x16x32xbf16, #tpu.memory_space<vmem>>, vector<1x16x32xbf16>
      %112 = vector.shape_cast %111 : vector<1x16x32xbf16> to vector<16x32xbf16>
      %cst_105 = arith.constant dense<0.000000e+00> : vector<8x32xf32>
      %113 = tpu.matmul %110, %112, %cst_105 {dimension_numbers = #tpu.dot_dimension_numbers<[1], [0], [0], [1], [0, 0, 1, 1], [], []>} : vector<8x16xbf16>, vector<16x32xbf16>, vector<8x32xf32> -> vector<8x32xf32>
      %114 = arith.addf %108, %113 : vector<8x32xf32>
      %115 = vector.extract_strided_slice %97 {offsets = [3, 0, 0], sizes = [1, 8, 16], strides = [1, 1, 1]} : vector<4x8x16xbf16> to vector<1x8x16xbf16>
      %116 = vector.shape_cast %115 : vector<1x8x16xbf16> to vector<8x16xbf16>
      %c3_106 = arith.constant 3 : index
      %c0_107 = arith.constant 0 : index
      %c0_108 = arith.constant 0 : index
      %117 = vector.load %arg8[%c3_106, %c0_107, %c0_108] : memref<4x16x32xbf16, #tpu.memory_space<vmem>>, vector<1x16x32xbf16>
      %118 = vector.shape_cast %117 : vector<1x16x32xbf16> to vector<16x32xbf16>
      %cst_109 = arith.constant dense<0.000000e+00> : vector<8x32xf32>
      %119 = tpu.matmul %116, %118, %cst_109 {dimension_numbers = #tpu.dot_dimension_numbers<[1], [0], [0], [1], [0, 0, 1, 1], [], []>} : vector<8x16xbf16>, vector<16x32xbf16>, vector<8x32xf32> -> vector<8x32xf32>
      %120 = arith.addf %114, %119 : vector<8x32xf32>
      %c0_110 = arith.constant 0 : index
      %c0_111 = arith.constant 0 : index
      %121 = vector.load %arg9[%c0_110, %c0_111] : memref<1x32xf32, #tpu.memory_space<vmem>>, vector<1x32xf32>
      %122 = vector.broadcast %121 : vector<1x32xf32> to vector<8x32xf32>
      %123 = arith.addf %120, %122 : vector<8x32xf32>
      %c0_112 = arith.constant 0 : index
      %c0_113 = arith.constant 0 : index
      %c0_114 = arith.constant 0 : index
      %124 = vector.load %arg10[%c0_112, %c0_113, %c0_114] : memref<1x8x32xf32, #tpu.memory_space<vmem>>, vector<1x8x32xf32>
      %125 = vector.shape_cast %124 : vector<1x8x32xf32> to vector<8x32xf32>
      %126 = vector.shape_cast %123 : vector<8x32xf32> to vector<1x8x32xf32>
      tpu.vector_store %arg10[%c0_112, %c0_113, %c0_114], %126 {strides = array<i32>} : memref<1x8x32xf32, #tpu.memory_space<vmem>>, vector<1x8x32xf32>,
    } else {
    }
    return
  }
  func.func @transform_0(%arg0: i32, %arg1: i32, %arg2: i32) -> (i32, i32, i32) {
    %c0_i32 = arith.constant 0 : i32
    %c0_i32_0 = arith.constant 0 : i32
    return %arg0, %arg1, %c0_i32 : i32, i32, i32
  }
  func.func @transform_1(%arg0: i32, %arg1: i32, %arg2: i32) -> (i32, i32, i32) {
    %c0_i32 = arith.constant 0 : i32
    %c0_i32_0 = arith.constant 0 : i32
    return %arg0, %arg2, %c0_i32 : i32, i32, i32
  }
  func.func @transform_2(%arg0: i32, %arg1: i32, %arg2: i32) -> (i32, i32, i32) {
    %c0_i32 = arith.constant 0 : i32
    %c0_i32_0 = arith.constant 0 : i32
    %c0_i32_1 = arith.constant 0 : i32
    %c0_i32_2 = arith.constant 0 : i32
    return %c0_i32, %c0_i32_0, %c0_i32_1 : i32, i32, i32
  }
  func.func @transform_3(%arg0: i32, %arg1: i32, %arg2: i32) -> (i32, i32, i32) {
    %c0_i32 = arith.constant 0 : i32
    %c0_i32_0 = arith.constant 0 : i32
    %c0_i32_1 = arith.constant 0 : i32
    %c0_i32_2 = arith.constant 0 : i32
    return %c0_i32, %c0_i32_0, %c0_i32_1 : i32, i32, i32
  }
  func.func @transform_4(%arg0: i32, %arg1: i32, %arg2: i32) -> (i32, i32, i32) {
    %c0_i32 = arith.constant 0 : i32
    %c0_i32_0 = arith.constant 0 : i32
    %c0_i32_1 = arith.constant 0 : i32
    %c0_i32_2 = arith.constant 0 : i32
    return %c0_i32, %c0_i32_0, %c0_i32_1 : i32, i32, i32
  }
  func.func @transform_5(%arg0: i32, %arg1: i32, %arg2: i32) -> (i32, i32, i32) {
    %c0_i32 = arith.constant 0 : i32
    %c0_i32_0 = arith.constant 0 : i32
    %c0_i32_1 = arith.constant 0 : i32
    %c0_i32_2 = arith.constant 0 : i32
    return %c0_i32, %c0_i32_0, %c0_i32_1 : i32, i32, i32
  }
  func.func @transform_6(%arg0: i32, %arg1: i32, %arg2: i32) -> (i32, i32) {
    %c0_i32 = arith.constant 0 : i32
    %c0_i32_0 = arith.constant 0 : i32
    %c0_i32_1 = arith.constant 0 : i32
    return %c0_i32, %c0_i32_0 : i32, i32
  }
  func.func @transform_7(%arg0: i32, %arg1: i32, %arg2: i32) -> (i32, i32, i32) {
    %c0_i32 = arith.constant 0 : i32
    %c0_i32_0 = arith.constant 0 : i32
    return %arg0, %arg1, %c0_i32 : i32, i32, i32
  }
}

</mosaic_0001>

<llo_original>
// kernel: tpu_custom_call.1
$region0: #{tpu_custom_call.1}
  #allocation0 [shape = 'u32[]', space=smem, size = 0x4, offset = 0x4, fixed_abs, tag = 'smem constant byte address 0x4 - core index']
  #allocation1 [shape = 'u32[144,128]{1,0:T(1,128)}', space=vmem, size = 0x12000, scoped, tag = 'internal scratch']
  #allocation2 [shape = 'bf16[4,8,16]{2,1,0:T(8,128)(2,1)}', space=vmem, size = 0x2000, scoped, tag = 'scratch operand']
  #allocation3 [shape = 'bf16[4,8,16]{2,1,0:T(8,128)(2,1)}', space=vmem, size = 0x2000, scoped, tag = 'scratch operand']
  #allocation4 [shape = 'bf16[4,8,16]{2,1,0:T(8,128)(2,1)}', space=vmem, size = 0x2000, scoped, tag = 'scratch operand']
  #allocation5 [shape = 'f32[4,8,1]{2,1,0:T(8,128)}', space=vmem, size = 0x4000, scoped, tag = 'scratch operand']
  #allocation6 [shape = 'f32[4,8,1]{2,1,0:T(8,128)}', space=vmem, size = 0x4000, scoped, tag = 'scratch operand']
  #allocation7 [shape = 'f32[4,8,16]{2,1,0:T(8,128)}', space=vmem, size = 0x4000, scoped, tag = 'scratch operand']
  %s0 = inlined_call_operand.vmem [shape: f32[2,8,32], index: 0, kind: input, shape index: {}]
  %s1 = inlined_call_operand.vmem [shape: f32[2,8,32], index: 1, kind: input, shape index: {}]
  %s2 = inlined_call_operand.vmem [shape: bf16[4,32,16], index: 2, kind: input, shape index: {}]
  %s3 = inlined_call_operand.vmem [shape: bf16[4,32,16], index: 3, kind: input, shape index: {}]
  %s4 = inlined_call_operand.vmem [shape: bf16[4,32,16], index: 4, kind: input, shape index: {}]
  %s5 = inlined_call_operand.vmem [shape: bf16[4,16,32], index: 5, kind: input, shape index: {}]
  %s6 = inlined_call_operand.vmem [shape: f32[1,32], index: 6, kind: input, shape index: {}]
  %s7 = inlined_call_operand.hbm [shape: f32[2,8,32], index: 7, kind: output, shape index: {}]
  %s8 = sld [smem:[#allocation0]]
  $region69: #{tpu_custom_call.1} parent=0
    _
  %s10 = ssub.s32 1, %s8
  %s11 = scalar_select 0, %s10, %s8
  $region1: #{tpu_custom_call.1} parent=0
    #allocation8 [shape = 'u8[8192]{0}', space=vmem, size = 0x2000, scoped, tag = 'output window, operand 0']
    #allocation9 [shape = 's32[2]{0}', space=sflag, size = 0x8, scoped, tag = 'scoped memory for tpu_custom_call.1']
    %12 = vsyncpa [#allocation9], 0
    %s13 = scalar_lea.sflag [#allocation9], 1
    %14 = vsyncpa %s13, 0
    loop: start=0, step=1, limit=4
    $region2: #{tpu_custom_call.1} parent=1 // loop_pre_header
      _
    $region3: #{tpu_custom_call.1} parent=1 // loop_header
      %s16 = sphi 0, %s20
      %p17 = scmp.ge.s32.totalorder %s16, 4
      %s23 = sphi 0, %s42
      %s24 = sphi 0, %s38
      %s25 = sphi 0, %s34
      %s26 = sphi 0, %s23
      %s27 = sphi 0, %s24
      %s28 = sphi 0, %s25
      %s29 = sphi 0, %s26
      %s30 = sphi 0, %s27
      %s31 = sphi 0, %s28
      %s47 = sphi 0, %s49
      %s50 = sphi 0, %s47
      %s51 = sphi 0, %s50
      %s67 = sphi 0, %s51
      %s75 = sphi 0, %s77
      %s78 = sphi 0, %s75
      %s79 = sphi 0, %s78
      %s95 = sphi 0, %s79
      %s99 = sphi 0, %s99
      %s101 = sphi 0, %s99
      %s102 = sphi 0, %s101
      %s116 = sphi 0, %s102
      %s120 = sphi 0, %s120
      %s122 = sphi 0, %s120
      %s123 = sphi 0, %s122
      %s137 = sphi 0, %s123
      %s141 = sphi 0, %s141
      %s143 = sphi 0, %s141
      %s144 = sphi 0, %s143
      %s158 = sphi 0, %s144
      %s162 = sphi 0, %s162
      %s164 = sphi 0, %s162
      %s165 = sphi 0, %s164
      %s179 = sphi 0, %s165
      %s183 = sphi 0, %s183
      %s185 = sphi 0, %s183
      %s186 = sphi 0, %s185
      %s200 = sphi 0, %s186
      %s208 = sphi 0, %s210
      %s211 = sphi 0, %s208
      %s212 = sphi 0, %s211
      %s228 = sphi 0, %s212
    $region4: #{tpu_custom_call.1} parent=1 // loop_header_branch
      %19 = sbr.rel (%p17) target = $region8
    $region5: #{tpu_custom_call.1} parent=1 // loop_body
      %s21 = ssub.s32 %s16, 1
      %s22 = ssub.s32 %s16, 2
      %s32 = sadd.s32 1, %s25
      %p33 = scmp.ge.s32.totalorder %s32, 1
      %s34 = scalar_select %p33, 0, %s32
      %s35 = sadd.s32 1, %s24
      %s36 = scalar_select %p33, %s35, %s24
      %p37 = scmp.ge.s32.totalorder %s36, 1
      %s38 = scalar_select %p37, 0, %s36
      %s39 = sadd.s32 1, %s23
      %s40 = scalar_select %p37, %s39, %s23
      %p41 = scmp.ge.s32.totalorder %s40, 2
      %s42 = scalar_select %p41, 0, %s40
      %s43 = ssub.s32 %s23, %s42
      %s44 = ssub.s32 %s24, %s38
      %s45 = sor.u32 %s43, %s44
      %p46 = scmp.eq.s32.totalorder %s45, 0
      %s48 = sadd.s32 %s47, 1
      %s49 = scalar_select %p46, %s47, %s48
      %p52 = pneg %p46
      %p53 = scmp.eq.s32.totalorder %s16, 1
      %p54 = por %p52, %p53
      %p55 = scmp.ne.s32.totalorder %s47, %s50
      %p56 = scmp.eq.s32.totalorder %s16, 0
      %p57 = por %p55, %p56
      %p58 = scmp.ne.s32.totalorder %s47, %s50
      %p59 = scmp.eq.s32.totalorder %s21, 1
      %p60 = por %p58, %p59
      %p61 = scmp.ne.s32.totalorder %s50, %s51
      %p62 = scmp.eq.s32.totalorder %s21, 0
      %p63 = por %p61, %p62
      %p64 = scmp.ne.s32.totalorder %s50, %s51
      %p65 = scmp.eq.s32.totalorder %s22, 1
      %p66 = por %p64, %p65
      %p68 = scmp.ne.s32.totalorder %s51, %s67
      %p69 = scmp.eq.s32.totalorder %s22, 0
      %p70 = por %p68, %p69
      %s71 = ssub.s32 %s23, %s42
      %s72 = ssub.s32 %s25, %s34
      %s73 = sor.u32 %s71, %s72
      %p74 = scmp.eq.s32.totalorder %s73, 0
      %s76 = sadd.s32 %s75, 1
      %s77 = scalar_select %p74, %s75, %s76
      %p80 = pneg %p74
      %p81 = scmp.eq.s32.totalorder %s16, 1
      %p82 = por %p80, %p81
      %p83 = scmp.ne.s32.totalorder %s75, %s78
      %p84 = scmp.eq.s32.totalorder %s16, 0
      %p85 = por %p83, %p84
      %p86 = scmp.ne.s32.totalorder %s75, %s78
      %p87 = scmp.eq.s32.totalorder %s21, 1
      %p88 = por %p86, %p87
      %p89 = scmp.ne.s32.totalorder %s78, %s79
      %p90 = scmp.eq.s32.totalorder %s21, 0
      %p91 = por %p89, %p90
      %p92 = scmp.ne.s32.totalorder %s78, %s79
      %p93 = scmp.eq.s32.totalorder %s22, 1
      %p94 = por %p92, %p93
      %p96 = scmp.ne.s32.totalorder %s79, %s95
      %p97 = scmp.eq.s32.totalorder %s22, 0
      %p98 = por %p96, %p97
      %s100 = sadd.s32 %s99, 1
      %p103 = scmp.eq.s32.totalorder %s16, 1
      %p104 = scmp.ne.s32.totalorder %s99, %s101
      %p105 = scmp.eq.s32.totalorder %s16, 0
      %p106 = por %p104, %p105
      %p107 = scmp.ne.s32.totalorder %s99, %s101
      %p108 = scmp.eq.s32.totalorder %s21, 1
      %p109 = por %p107, %p108
      %p110 = scmp.ne.s32.totalorder %s101, %s102
      %p111 = scmp.eq.s32.totalorder %s21, 0
      %p112 = por %p110, %p111
      %p113 = scmp.ne.s32.totalorder %s101, %s102
      %p114 = scmp.eq.s32.totalorder %s22, 1
      %p115 = por %p113, %p114
      %p117 = scmp.ne.s32.totalorder %s102, %s116
      %p118 = scmp.eq.s32.totalorder %s22, 0
      %p119 = por %p117, %p118
      %s121 = sadd.s32 %s120, 1
      %p124 = scmp.eq.s32.totalorder %s16, 1
      %p125 = scmp.ne.s32.totalorder %s120, %s122
      %p126 = scmp.eq.s32.totalorder %s16, 0
      %p127 = por %p125, %p126
      %p128 = scmp.ne.s32.totalorder %s120, %s122
      %p129 = scmp.eq.s32.totalorder %s21, 1
      %p130 = por %p128, %p129
      %p131 = scmp.ne.s32.totalorder %s122, %s123
      %p132 = scmp.eq.s32.totalorder %s21, 0
      %p133 = por %p131, %p132
      %p134 = scmp.ne.s32.totalorder %s122, %s123
      %p135 = scmp.eq.s32.totalorder %s22, 1
      %p136 = por %p134, %p135
      %p138 = scmp.ne.s32.totalorder %s123, %s137
      %p139 = scmp.eq.s32.totalorder %s22, 0
      %p140 = por %p138, %p139
      %s142 = sadd.s32 %s141, 1
      %p145 = scmp.eq.s32.totalorder %s16, 1
      %p146 = scmp.ne.s32.totalorder %s141, %s143
      %p147 = scmp.eq.s32.totalorder %s16, 0
      %p148 = por %p146, %p147
      %p149 = scmp.ne.s32.totalorder %s141, %s143
      %p150 = scmp.eq.s32.totalorder %s21, 1
      %p151 = por %p149, %p150
      %p152 = scmp.ne.s32.totalorder %s143, %s144
      %p153 = scmp.eq.s32.totalorder %s21, 0
      %p154 = por %p152, %p153
      %p155 = scmp.ne.s32.totalorder %s143, %s144
      %p156 = scmp.eq.s32.totalorder %s22, 1
      %p157 = por %p155, %p156
      %p159 = scmp.ne.s32.totalorder %s144, %s158
      %p160 = scmp.eq.s32.totalorder %s22, 0
      %p161 = por %p159, %p160
      %s163 = sadd.s32 %s162, 1
      %p166 = scmp.eq.s32.totalorder %s16, 1
      %p167 = scmp.ne.s32.totalorder %s162, %s164
      %p168 = scmp.eq.s32.totalorder %s16, 0
      %p169 = por %p167, %p168
      %p170 = scmp.ne.s32.totalorder %s162, %s164
      %p171 = scmp.eq.s32.totalorder %s21, 1
      %p172 = por %p170, %p171
      %p173 = scmp.ne.s32.totalorder %s164, %s165
      %p174 = scmp.eq.s32.totalorder %s21, 0
      %p175 = por %p173, %p174
      %p176 = scmp.ne.s32.totalorder %s164, %s165
      %p177 = scmp.eq.s32.totalorder %s22, 1
      %p178 = por %p176, %p177
      %p180 = scmp.ne.s32.totalorder %s165, %s179
      %p181 = scmp.eq.s32.totalorder %s22, 0
      %p182 = por %p180, %p181
      %s184 = sadd.s32 %s183, 1
      %p187 = scmp.eq.s32.totalorder %s16, 1
      %p188 = scmp.ne.s32.totalorder %s183, %s185
      %p189 = scmp.eq.s32.totalorder %s16, 0
      %p190 = por %p188, %p189
      %p191 = scmp.ne.s32.totalorder %s183, %s185
      %p192 = scmp.eq.s32.totalorder %s21, 1
      %p193 = por %p191, %p192
      %p194 = scmp.ne.s32.totalorder %s185, %s186
      %p195 = scmp.eq.s32.totalorder %s21, 0
      %p196 = por %p194, %p195
      %p197 = scmp.ne.s32.totalorder %s185, %s186
      %p198 = scmp.eq.s32.totalorder %s22, 1
      %p199 = por %p197, %p198
      %p201 = scmp.ne.s32.totalorder %s186, %s200
      %p202 = scmp.eq.s32.totalorder %s22, 0
      %p203 = por %p201, %p202
      %s204 = ssub.s32 %s23, %s42
      %s205 = ssub.s32 %s24, %s38
      %s206 = sor.u32 %s204, %s205
      %p207 = scmp.eq.s32.totalorder %s206, 0
      %s209 = sadd.s32 %s208, 1
      %s210 = scalar_select %p207, %s208, %s209
      %p213 = pneg %p207
      %p214 = scmp.eq.s32.totalorder %s16, 1
      %p215 = por %p213, %p214
      %p216 = scmp.ne.s32.totalorder %s208, %s211
      %p217 = scmp.eq.s32.totalorder %s16, 0
      %p218 = por %p216, %p217
      %p219 = scmp.ne.s32.totalorder %s208, %s211
      %p220 = scmp.eq.s32.totalorder %s21, 1
      %p221 = por %p219, %p220
      %p222 = scmp.ne.s32.totalorder %s211, %s212
      %p223 = scmp.eq.s32.totalorder %s21, 0
      %p224 = por %p222, %p223
      %p225 = scmp.ne.s32.totalorder %s211, %s212
      %p226 = scmp.eq.s32.totalorder %s22, 1
      %p227 = por %p225, %p226
      %p229 = scmp.ne.s32.totalorder %s212, %s228
      %p230 = scmp.eq.s32.totalorder %s22, 0
      %p231 = por %p229, %p230
      %p232 = scmp.le.s32.totalorder 1, %s16
      %p233 = scmp.lt.s32.totalorder %s16, 3
      %p234 = pnand %p232, %p233
      %p235 = pneg %p234
      // Predicated region
      $region9: #{tpu_custom_call.1} parent=5 // pred_check
        _
      $region10: #{tpu_custom_call.1} parent=5 // pred_check_branch
        %237 = sbr.rel (%p234) target = $region12
      $region11: #{tpu_custom_call.1} parent=5 // pred_region
        %s238 = ssub.s32 %s16, 1
        // Predicated region
        $region13: #{tpu_custom_call.1} parent=11 // pred_check
          %p239 = pneg %p112
        $region14: #{tpu_custom_call.1} parent=11 // pred_check_branch
          %241 = sbr.rel (%p239) target = $region16
        $region15: #{tpu_custom_call.1} parent=11 // pred_region
          _
        $region16: #{tpu_custom_call.1} parent=11 // pred_fallthru
          _
        // Predicated region
        $region17: #{tpu_custom_call.1} parent=11 // pred_check
          %p242 = pneg %p133
        $region18: #{tpu_custom_call.1} parent=11 // pred_check_branch
          %244 = sbr.rel (%p242) target = $region20
        $region19: #{tpu_custom_call.1} parent=11 // pred_region
          _
        $region20: #{tpu_custom_call.1} parent=11 // pred_fallthru
          _
        // Predicated region
        $region21: #{tpu_custom_call.1} parent=11 // pred_check
          %p245 = pneg %p154
        $region22: #{tpu_custom_call.1} parent=11 // pred_check_branch
          %247 = sbr.rel (%p245) target = $region24
        $region23: #{tpu_custom_call.1} parent=11 // pred_region
          _
        $region24: #{tpu_custom_call.1} parent=11 // pred_fallthru
          _
        // Predicated region
        $region25: #{tpu_custom_call.1} parent=11 // pred_check
          %p248 = pneg %p175
        $region26: #{tpu_custom_call.1} parent=11 // pred_check_branch
          %250 = sbr.rel (%p248) target = $region28
        $region27: #{tpu_custom_call.1} parent=11 // pred_region
          _
        $region28: #{tpu_custom_call.1} parent=11 // pred_fallthru
          _
        // Predicated region
        $region29: #{tpu_custom_call.1} parent=11 // pred_check
          %p251 = pneg %p196
        $region30: #{tpu_custom_call.1} parent=11 // pred_check_branch
          %253 = sbr.rel (%p251) target = $region32
        $region31: #{tpu_custom_call.1} parent=11 // pred_region
          _
        $region32: #{tpu_custom_call.1} parent=11 // pred_fallthru
          _
      $region12: #{tpu_custom_call.1} parent=5 // pred_fallthru
        _
      %p254 = scmp.lt.s32.totalorder %s16, 2
      // Predicated region
      $region33: #{tpu_custom_call.1} parent=5 // pred_check
        %p255 = pneg %p254
      $region34: #{tpu_custom_call.1} parent=5 // pred_check_branch
        %257 = sbr.rel (%p255) target = $region36
      $region35: #{tpu_custom_call.1} parent=5 // pred_region
        // Predicated region
        $region37: #{tpu_custom_call.1} parent=35 // pred_check
          %p258 = pneg %p57
        $region38: #{tpu_custom_call.1} parent=35 // pred_check_branch
          %260 = sbr.rel (%p258) target = $region40
        $region39: #{tpu_custom_call.1} parent=35 // pred_region
          %p261 = scmp.lt.s32.totalorder %s23, 1
          %s262 = scalar_select %p261, %s23, 1
          %p263 = scmp.lt.s32.totalorder %s24, 0
          %s264 = scalar_select %p263, %s24, 0
          %s265 = sadd.s32 %s264, %s262
          %s266 = smul.addr %s265, 8
          %s267 = scalar_lea.vmem %s0, %s266
        $region40: #{tpu_custom_call.1} parent=35 // pred_fallthru
          _
        // Predicated region
        $region41: #{tpu_custom_call.1} parent=35 // pred_check
          %p268 = pneg %p85
        $region42: #{tpu_custom_call.1} parent=35 // pred_check_branch
          %270 = sbr.rel (%p268) target = $region44
        $region43: #{tpu_custom_call.1} parent=35 // pred_region
          %p271 = scmp.lt.s32.totalorder %s23, 1
          %s272 = scalar_select %p271, %s23, 1
          %p273 = scmp.lt.s32.totalorder %s25, 0
          %s274 = scalar_select %p273, %s25, 0
          %s275 = sadd.s32 %s274, %s272
          %s276 = smul.addr %s275, 8
          %s277 = scalar_lea.vmem %s1, %s276
        $region44: #{tpu_custom_call.1} parent=35 // pred_fallthru
          _
      $region36: #{tpu_custom_call.1} parent=5 // pred_fallthru
        _
      %p278 = scmp.le.s32.totalorder 1, %s16
      %p279 = scmp.lt.s32.totalorder %s16, 3
      %p280 = pnand %p278, %p279
      %p281 = pneg %p280
      // Predicated region
      $region45: #{tpu_custom_call.1} parent=5 // pred_check
        _
      $region46: #{tpu_custom_call.1} parent=5 // pred_check_branch
        %283 = sbr.rel (%p280) target = $region48
      $region47: #{tpu_custom_call.1} parent=5 // pred_region
        %s284 = ssub.s32 %s16, 1
        %p285 = scmp.lt.s32.totalorder %s26, 1
        %s286 = scalar_select %p285, %s26, 1
        %p287 = scmp.lt.s32.totalorder %s27, 0
        %s288 = scalar_select %p287, %s27, 0
        %s289 = sadd.s32 %s288, %s286
        %s290 = smul.addr %s289, 8
        %s291 = scalar_lea.vmem %s0, %s290
        %p292 = pneg %p63
        %p293 = pneg %p60
        %p294 = scmp.lt.s32.totalorder %s26, 1
        %s295 = scalar_select %p294, %s26, 1
        %p296 = scmp.lt.s32.totalorder %s28, 0
        %s297 = scalar_select %p296, %s28, 0
        %s298 = sadd.s32 %s297, %s295
        %s299 = smul.addr %s298, 8
        %s300 = scalar_lea.vmem %s1, %s299
        %p301 = pneg %p91
        %p302 = pneg %p88
        %p303 = pneg %p112
        %p304 = pneg %p109
        %p305 = pneg %p133
        %p306 = pneg %p130
        %p307 = pneg %p154
        %p308 = pneg %p151
        %p309 = pneg %p175
        %p310 = pneg %p172
        %p311 = pneg %p196
        %p312 = pneg %p193
        %p313 = pneg %p224
        %p314 = pneg %p221
        %s315 = sand.u32 %s211, 1
        %s316 = scalar_lea.sflag [#allocation9], %s315
        %s317 = sand.u32 %s211, 1
        %s318 = smul.addr %s317, 8
        %s319 = scalar_lea.vmem [#allocation8], %s318
        %p320 = scmp.lt.s32.totalorder %s26, 1
        %s321 = scalar_select %p320, %s26, 1
        %p322 = scmp.lt.s32.totalorder %s27, 0
        %s323 = scalar_select %p322, %s27, 0
        %s324 = sadd.s32 %s323, %s321
        %s325 = smul.addr %s324, 8
        %s326 = scalar_lea.vmem %s0, %s325
        %p327 = scmp.lt.s32.totalorder %s26, 1
        %s328 = scalar_select %p327, %s26, 1
        %p329 = scmp.lt.s32.totalorder %s28, 0
        %s330 = scalar_select %p329, %s28, 0
        %s331 = sadd.s32 %s330, %s328
        %s332 = smul.addr %s331, 8
        %s333 = scalar_lea.vmem %s1, %s332
        %v335 = vld [vmem:[%s333] sm:$0xff]
        %v336 = vpack.c.bf16 %v335, %v335
        %p337 = scmp.eq.s32.totalorder %s28, 0
        // Predicated region
        $region49: #{tpu_custom_call.1} parent=47 // pred_check
          %p338 = pneg %p337
        $region50: #{tpu_custom_call.1} parent=47 // pred_check_branch
          %340 = sbr.rel (%p338) target = $region52
        $region51: #{tpu_custom_call.1} parent=47 // pred_region
          %vm341 = vcmask 7168
          %342 = vst.msk [vmem:[#allocation5] sm:$0xff] %vm341, -inf
          %343 = vst.msk [vmem:[#allocation5 + $0x8] sm:$0xff] %vm341, -inf
          %344 = vst.msk [vmem:[#allocation5 + $0x10] sm:$0xff] %vm341, -inf
          %345 = vst.msk [vmem:[#allocation5 + $0x18] sm:$0xff] %vm341, -inf
          %346 = vst.msk [vmem:[#allocation6] sm:$0xff] %vm341, 0.0
          %347 = vst.msk [vmem:[#allocation6 + $0x8] sm:$0xff] %vm341, 0.0
          %348 = vst.msk [vmem:[#allocation6 + $0x10] sm:$0xff] %vm341, 0.0
          %349 = vst.msk [vmem:[#allocation6 + $0x18] sm:$0xff] %vm341, 0.0
          %vm350 = vcmask 130048
          %351 = vst.msk [vmem:[#allocation7] sm:$0xff] %vm350, 0.0
          %352 = vst.msk [vmem:[#allocation7 + $0x8] sm:$0xff] %vm350, 0.0
          %353 = vst.msk [vmem:[#allocation7 + $0x10] sm:$0xff] %vm350, 0.0
          %354 = vst.msk [vmem:[#allocation7 + $0x18] sm:$0xff] %vm350, 0.0
          %v355 = vld [vmem:[%s326] sm:$0xff]
          %v356 = vpack.c.bf16 %v355, %v355
          %v357 = vld [vmem:[%s2] sm:$0xf]
          %v358 = vld [vmem:[%s2 + $0x4] sm:$0xf]
          %v359 = vld [vmem:[%s2 + $0x8] sm:$0xf]
          %v360 = vld [vmem:[%s2 + $0xc] sm:$0xf]
          %v365 = vunpack.c.l.b16 %v357
          %v366 = vunpack.c.l.b16 %v358
          %v367 = vunpack.c.l.b16 %v359
          %v368 = vunpack.c.l.b16 %v360
          %v369 = vpack.c.b16 %v366, %v365
          %v370 = vpack.c.b16 %v368, %v367
          %vm373 = vcmask 261120
          %v375 = vsel %vm373, %v356, 0
          %377 = vmatprep.subr.bf16.mxu0 0
          %378 = vmatpush1.bf16.msra.mxu0 %v369
          %379 = vmatprep.subr.bf16.mxu0 0
          %380 = vmatpush1.bf16.msra.mxu0 %v370
          %381 = vmatprep.subr.bf16.mxu0 0
          %382 = vmatpush1.bf16.msra.mxu0 0
          %383 = vmatprep.subr.bf16.mxu0 0
          %384 = vmatpush1.bf16.msra.mxu0 0
          %385 = vmatprep.subr.bf16.mxu0 0
          %386 = vmatpush1.bf16.msra.mxu0 0
          %387 = vmatprep.subr.bf16.mxu0 0
          %388 = vmatpush1.bf16.msra.mxu0 0
          %389 = vmatprep.subr.bf16.mxu0 0
          %390 = vmatpush1.bf16.msra.mxu0 0
          %391 = vmatprep.subr.bf16.mxu0 0
          %392 = vmatpush1.bf16.msra.mxu0 0
          %393 = vmatprep.subr.bf16.mxu0 0
          %394 = vmatpush1.bf16.msra.mxu0 0
          %395 = vmatprep.subr.bf16.mxu0 0
          %396 = vmatpush1.bf16.msra.mxu0 0
          %397 = vmatprep.subr.bf16.mxu0 0
          %398 = vmatpush1.bf16.msra.mxu0 0
          %399 = vmatprep.subr.bf16.mxu0 0
          %400 = vmatpush1.bf16.msra.mxu0 0
          %401 = vmatprep.subr.bf16.mxu0 0
          %402 = vmatpush1.bf16.msra.mxu0 0
          %403 = vmatprep.subr.bf16.mxu0 0
          %404 = vmatpush1.bf16.msra.mxu0 0
          %405 = vmatprep.subr.bf16.mxu0 0
          %406 = vmatpush1.bf16.msra.mxu0 0
          %407 = vmatprep.subr.bf16.mxu0 0
          %408 = vmatpush1.bf16.msra.mxu0 0
          %409 = vmatprep.mubr.bf16.mxu0 0
          %410 = vmatmul.mubr.bf16.gmra.mrb[0].mxu0 %v375
          %v411 = vpop.f32.mrb[0].mxu0
          %v412 = vadd.f32 0.0, %v411
          %v413 = vpop.f32.mrb[0].mxu0
          %v414 = vpop.f32.mrb[0].mxu0
          %v415 = vpop.f32.mrb[0].mxu0
          %416 = vdwg.mxu0
          %v417 = vpack.c.bf16 %v412, %v412
          %vm418 = vcmask 125952
          %419 = vst.msk [vmem:[#allocation2] sm:$0xf] %vm418, %v417
          %s420 = scalar_lea.vmem %s2, 16
          %v421 = vld [vmem:[%s420] sm:$0xf]
          %v422 = vld [vmem:[%s420 + $0x4] sm:$0xf]
          %v423 = vld [vmem:[%s420 + $0x8] sm:$0xf]
          %v424 = vld [vmem:[%s420 + $0xc] sm:$0xf]
          %v429 = vunpack.c.l.b16 %v421
          %v430 = vunpack.c.l.b16 %v422
          %v431 = vunpack.c.l.b16 %v423
          %v432 = vunpack.c.l.b16 %v424
          %v433 = vpack.c.b16 %v430, %v429
          %v434 = vpack.c.b16 %v432, %v431
          %437 = vmatprep.subr.bf16.mxu0 0
          %438 = vmatpush1.bf16.msra.mxu0 %v433
          %439 = vmatprep.subr.bf16.mxu0 0
          %440 = vmatpush1.bf16.msra.mxu0 %v434
          %441 = vmatprep.subr.bf16.mxu0 0
          %442 = vmatpush1.bf16.msra.mxu0 0
          %443 = vmatprep.subr.bf16.mxu0 0
          %444 = vmatpush1.bf16.msra.mxu0 0
          %445 = vmatprep.subr.bf16.mxu0 0
          %446 = vmatpush1.bf16.msra.mxu0 0
          %447 = vmatprep.subr.bf16.mxu0 0
          %448 = vmatpush1.bf16.msra.mxu0 0
          %449 = vmatprep.subr.bf16.mxu0 0
          %450 = vmatpush1.bf16.msra.mxu0 0
          %451 = vmatprep.subr.bf16.mxu0 0
          %452 = vmatpush1.bf16.msra.mxu0 0
          %453 = vmatprep.subr.bf16.mxu0 0
          %454 = vmatpush1.bf16.msra.mxu0 0
          %455 = vmatprep.subr.bf16.mxu0 0
          %456 = vmatpush1.bf16.msra.mxu0 0
          %457 = vmatprep.subr.bf16.mxu0 0
          %458 = vmatpush1.bf16.msra.mxu0 0
          %459 = vmatprep.subr.bf16.mxu0 0
          %460 = vmatpush1.bf16.msra.mxu0 0
          %461 = vmatprep.subr.bf16.mxu0 0
          %462 = vmatpush1.bf16.msra.mxu0 0
          %463 = vmatprep.subr.bf16.mxu0 0
          %464 = vmatpush1.bf16.msra.mxu0 0
          %465 = vmatprep.subr.bf16.mxu0 0
          %466 = vmatpush1.bf16.msra.mxu0 0
          %467 = vmatprep.subr.bf16.mxu0 0
          %468 = vmatpush1.bf16.msra.mxu0 0
          %469 = vmatprep.mubr.bf16.mxu0 0
          %470 = vmatmul.mubr.bf16.gmra.mrb[0].mxu0 %v375
          %v471 = vpop.f32.mrb[0].mxu0
          %v472 = vadd.f32 0.0, %v471
          %v473 = vpop.f32.mrb[0].mxu0
          %v474 = vpop.f32.mrb[0].mxu0
          %v475 = vpop.f32.mrb[0].mxu0
          %476 = vdwg.mxu0
          %v477 = vpack.c.bf16 %v472, %v472
          %s478 = scalar_lea.vmem [#allocation2], 4
          %479 = vst.msk [vmem:[%s478] sm:$0xf] %vm418, %v477
          %s480 = scalar_lea.vmem %s2, 32
          %v481 = vld [vmem:[%s480] sm:$0xf]
          %v482 = vld [vmem:[%s480 + $0x4] sm:$0xf]
          %v483 = vld [vmem:[%s480 + $0x8] sm:$0xf]
          %v484 = vld [vmem:[%s480 + $0xc] sm:$0xf]
          %v489 = vunpack.c.l.b16 %v481
          %v490 = vunpack.c.l.b16 %v482
          %v491 = vunpack.c.l.b16 %v483
          %v492 = vunpack.c.l.b16 %v484
          %v493 = vpack.c.b16 %v490, %v489
          %v494 = vpack.c.b16 %v492, %v491
          %497 = vmatprep.subr.bf16.mxu0 0
          %498 = vmatpush1.bf16.msra.mxu0 %v493
          %499 = vmatprep.subr.bf16.mxu0 0
          %500 = vmatpush1.bf16.msra.mxu0 %v494
          %501 = vmatprep.subr.bf16.mxu0 0
          %502 = vmatpush1.bf16.msra.mxu0 0
          %503 = vmatprep.subr.bf16.mxu0 0
          %504 = vmatpush1.bf16.msra.mxu0 0
          %505 = vmatprep.subr.bf16.mxu0 0
          %506 = vmatpush1.bf16.msra.mxu0 0
          %507 = vmatprep.subr.bf16.mxu0 0
          %508 = vmatpush1.bf16.msra.mxu0 0
          %509 = vmatprep.subr.bf16.mxu0 0
          %510 = vmatpush1.bf16.msra.mxu0 0
          %511 = vmatprep.subr.bf16.mxu0 0
          %512 = vmatpush1.bf16.msra.mxu0 0
          %513 = vmatprep.subr.bf16.mxu0 0
          %514 = vmatpush1.bf16.msra.mxu0 0
          %515 = vmatprep.subr.bf16.mxu0 0
          %516 = vmatpush1.bf16.msra.mxu0 0
          %517 = vmatprep.subr.bf16.mxu0 0
          %518 = vmatpush1.bf16.msra.mxu0 0
          %519 = vmatprep.subr.bf16.mxu0 0
          %520 = vmatpush1.bf16.msra.mxu0 0
          %521 = vmatprep.subr.bf16.mxu0 0
          %522 = vmatpush1.bf16.msra.mxu0 0
          %523 = vmatprep.subr.bf16.mxu0 0
          %524 = vmatpush1.bf16.msra.mxu0 0
          %525 = vmatprep.subr.bf16.mxu0 0
          %526 = vmatpush1.bf16.msra.mxu0 0
          %527 = vmatprep.subr.bf16.mxu0 0
          %528 = vmatpush1.bf16.msra.mxu0 0
          %529 = vmatprep.mubr.bf16.mxu0 0
          %530 = vmatmul.mubr.bf16.gmra.mrb[0].mxu0 %v375
          %v531 = vpop.f32.mrb[0].mxu0
          %v532 = vadd.f32 0.0, %v531
          %v533 = vpop.f32.mrb[0].mxu0
          %v534 = vpop.f32.mrb[0].mxu0
          %v535 = vpop.f32.mrb[0].mxu0
          %536 = vdwg.mxu0
          %v537 = vpack.c.bf16 %v532, %v532
          %s538 = scalar_lea.vmem [#allocation2], 8
          %539 = vst.msk [vmem:[%s538] sm:$0xf] %vm418, %v537
          %s540 = scalar_lea.vmem %s2, 48
          %v541 = vld [vmem:[%s540] sm:$0xf]
          %v542 = vld [vmem:[%s540 + $0x4] sm:$0xf]
          %v543 = vld [vmem:[%s540 + $0x8] sm:$0xf]
          %v544 = vld [vmem:[%s540 + $0xc] sm:$0xf]
          %v549 = vunpack.c.l.b16 %v541
          %v550 = vunpack.c.l.b16 %v542
          %v551 = vunpack.c.l.b16 %v543
          %v552 = vunpack.c.l.b16 %v544
          %v553 = vpack.c.b16 %v550, %v549
          %v554 = vpack.c.b16 %v552, %v551
          %557 = vmatprep.subr.bf16.mxu0 0
          %558 = vmatpush1.bf16.msra.mxu0 %v553
          %559 = vmatprep.subr.bf16.mxu0 0
          %560 = vmatpush1.bf16.msra.mxu0 %v554
          %561 = vmatprep.subr.bf16.mxu0 0
          %562 = vmatpush1.bf16.msra.mxu0 0
          %563 = vmatprep.subr.bf16.mxu0 0
          %564 = vmatpush1.bf16.msra.mxu0 0
          %565 = vmatprep.subr.bf16.mxu0 0
          %566 = vmatpush1.bf16.msra.mxu0 0
          %567 = vmatprep.subr.bf16.mxu0 0
          %568 = vmatpush1.bf16.msra.mxu0 0
          %569 = vmatprep.subr.bf16.mxu0 0
          %570 = vmatpush1.bf16.msra.mxu0 0
          %571 = vmatprep.subr.bf16.mxu0 0
          %572 = vmatpush1.bf16.msra.mxu0 0
          %573 = vmatprep.subr.bf16.mxu0 0
          %574 = vmatpush1.bf16.msra.mxu0 0
          %575 = vmatprep.subr.bf16.mxu0 0
          %576 = vmatpush1.bf16.msra.mxu0 0
          %577 = vmatprep.subr.bf16.mxu0 0
          %578 = vmatpush1.bf16.msra.mxu0 0
          %579 = vmatprep.subr.bf16.mxu0 0
          %580 = vmatpush1.bf16.msra.mxu0 0
          %581 = vmatprep.subr.bf16.mxu0 0
          %582 = vmatpush1.bf16.msra.mxu0 0
          %583 = vmatprep.subr.bf16.mxu0 0
          %584 = vmatpush1.bf16.msra.mxu0 0
          %585 = vmatprep.subr.bf16.mxu0 0
          %586 = vmatpush1.bf16.msra.mxu0 0
          %587 = vmatprep.subr.bf16.mxu0 0
          %588 = vmatpush1.bf16.msra.mxu0 0
          %589 = vmatprep.mubr.bf16.mxu0 0
          %590 = vmatmul.mubr.bf16.gmra.mrb[0].mxu0 %v375
          %v591 = vpop.f32.mrb[0].mxu0
          %v592 = vadd.f32 0.0, %v591
          %v593 = vpop.f32.mrb[0].mxu0
          %v594 = vpop.f32.mrb[0].mxu0
          %v595 = vpop.f32.mrb[0].mxu0
          %596 = vdwg.mxu0
          %v597 = vpack.c.bf16 %v592, %v592
          %s598 = scalar_lea.vmem [#allocation2], 12
          %599 = vst.msk [vmem:[%s598] sm:$0xf] %vm418, %v597
        $region52: #{tpu_custom_call.1} parent=47 // pred_fallthru
          _
        %v600 = vld [vmem:[%s3] sm:$0xf]
        %v601 = vld [vmem:[%s3 + $0x4] sm:$0xf]
        %v602 = vld [vmem:[%s3 + $0x8] sm:$0xf]
        %v603 = vld [vmem:[%s3 + $0xc] sm:$0xf]
        %v608 = vunpack.c.l.b16 %v600
        %v609 = vunpack.c.l.b16 %v601
        %v610 = vunpack.c.l.b16 %v602
        %v611 = vunpack.c.l.b16 %v603
        %v612 = vpack.c.b16 %v609, %v608
        %v613 = vpack.c.b16 %v611, %v610
        %vm616 = vcmask 261120
        %v618 = vsel %vm616, %v336, 0
        %620 = vmatprep.subr.bf16.mxu0 0
        %621 = vmatpush1.bf16.msra.mxu0 %v612
        %622 = vmatprep.subr.bf16.mxu0 0
        %623 = vmatpush1.bf16.msra.mxu0 %v613
        %624 = vmatprep.subr.bf16.mxu0 0
        %625 = vmatpush1.bf16.msra.mxu0 0
        %626 = vmatprep.subr.bf16.mxu0 0
        %627 = vmatpush1.bf16.msra.mxu0 0
        %628 = vmatprep.subr.bf16.mxu0 0
        %629 = vmatpush1.bf16.msra.mxu0 0
        %630 = vmatprep.subr.bf16.mxu0 0
        %631 = vmatpush1.bf16.msra.mxu0 0
        %632 = vmatprep.subr.bf16.mxu0 0
        %633 = vmatpush1.bf16.msra.mxu0 0
        %634 = vmatprep.subr.bf16.mxu0 0
        %635 = vmatpush1.bf16.msra.mxu0 0
        %636 = vmatprep.subr.bf16.mxu0 0
        %637 = vmatpush1.bf16.msra.mxu0 0
        %638 = vmatprep.subr.bf16.mxu0 0
        %639 = vmatpush1.bf16.msra.mxu0 0
        %640 = vmatprep.subr.bf16.mxu0 0
        %641 = vmatpush1.bf16.msra.mxu0 0
        %642 = vmatprep.subr.bf16.mxu0 0
        %643 = vmatpush1.bf16.msra.mxu0 0
        %644 = vmatprep.subr.bf16.mxu0 0
        %645 = vmatpush1.bf16.msra.mxu0 0
        %646 = vmatprep.subr.bf16.mxu0 0
        %647 = vmatpush1.bf16.msra.mxu0 0
        %648 = vmatprep.subr.bf16.mxu0 0
        %649 = vmatpush1.bf16.msra.mxu0 0
        %650 = vmatprep.subr.bf16.mxu0 0
        %651 = vmatpush1.bf16.msra.mxu0 0
        %652 = vmatprep.mubr.bf16.mxu0 0
        %653 = vmatmul.mubr.bf16.gmra.mrb[0].mxu0 %v618
        %v654 = vpop.f32.mrb[0].mxu0
        %v655 = vadd.f32 0.0, %v654
        %v656 = vpop.f32.mrb[0].mxu0
        %v657 = vpop.f32.mrb[0].mxu0
        %v658 = vpop.f32.mrb[0].mxu0
        %659 = vdwg.mxu0
        %v660 = vpack.c.bf16 %v655, %v655
        %vm661 = vcmask 125952
        %662 = vst.msk [vmem:[#allocation3] sm:$0xf] %vm661, %v660
        %v663 = vld [vmem:[%s4] sm:$0xf]
        %v664 = vld [vmem:[%s4 + $0x4] sm:$0xf]
        %v665 = vld [vmem:[%s4 + $0x8] sm:$0xf]
        %v666 = vld [vmem:[%s4 + $0xc] sm:$0xf]
        %v671 = vunpack.c.l.b16 %v663
        %v672 = vunpack.c.l.b16 %v664
        %v673 = vunpack.c.l.b16 %v665
        %v674 = vunpack.c.l.b16 %v666
        %v675 = vpack.c.b16 %v672, %v671
        %v676 = vpack.c.b16 %v674, %v673
        %679 = vmatprep.subr.bf16.mxu0 0
        %680 = vmatpush1.bf16.msra.mxu0 %v675
        %681 = vmatprep.subr.bf16.mxu0 0
        %682 = vmatpush1.bf16.msra.mxu0 %v676
        %683 = vmatprep.subr.bf16.mxu0 0
        %684 = vmatpush1.bf16.msra.mxu0 0
        %685 = vmatprep.subr.bf16.mxu0 0
        %686 = vmatpush1.bf16.msra.mxu0 0
        %687 = vmatprep.subr.bf16.mxu0 0
        %688 = vmatpush1.bf16.msra.mxu0 0
        %689 = vmatprep.subr.bf16.mxu0 0
        %690 = vmatpush1.bf16.msra.mxu0 0
        %691 = vmatprep.subr.bf16.mxu0 0
        %692 = vmatpush1.bf16.msra.mxu0 0
        %693 = vmatprep.subr.bf16.mxu0 0
        %694 = vmatpush1.bf16.msra.mxu0 0
        %695 = vmatprep.subr.bf16.mxu0 0
        %696 = vmatpush1.bf16.msra.mxu0 0
        %697 = vmatprep.subr.bf16.mxu0 0
        %698 = vmatpush1.bf16.msra.mxu0 0
        %699 = vmatprep.subr.bf16.mxu0 0
        %700 = vmatpush1.bf16.msra.mxu0 0
        %701 = vmatprep.subr.bf16.mxu0 0
        %702 = vmatpush1.bf16.msra.mxu0 0
        %703 = vmatprep.subr.bf16.mxu0 0
        %704 = vmatpush1.bf16.msra.mxu0 0
        %705 = vmatprep.subr.bf16.mxu0 0
        %706 = vmatpush1.bf16.msra.mxu0 0
        %707 = vmatprep.subr.bf16.mxu0 0
        %708 = vmatpush1.bf16.msra.mxu0 0
        %709 = vmatprep.subr.bf16.mxu0 0
        %710 = vmatpush1.bf16.msra.mxu0 0
        %711 = vmatprep.mubr.bf16.mxu0 0
        %712 = vmatmul.mubr.bf16.gmra.mrb[0].mxu0 %v618
        %v713 = vpop.f32.mrb[0].mxu0
        %v714 = vadd.f32 0.0, %v713
        %v715 = vpop.f32.mrb[0].mxu0
        %v716 = vpop.f32.mrb[0].mxu0
        %v717 = vpop.f32.mrb[0].mxu0
        %718 = vdwg.mxu0
        %v719 = vpack.c.bf16 %v714, %v714
        %720 = vst.msk [vmem:[#allocation4] sm:$0xf] %vm661, %v719
        %s721 = scalar_lea.vmem %s3, 16
        %v722 = vld [vmem:[%s721] sm:$0xf]
        %v723 = vld [vmem:[%s721 + $0x4] sm:$0xf]
        %v724 = vld [vmem:[%s721 + $0x8] sm:$0xf]
        %v725 = vld [vmem:[%s721 + $0xc] sm:$0xf]
        %v730 = vunpack.c.l.b16 %v722
        %v731 = vunpack.c.l.b16 %v723
        %v732 = vunpack.c.l.b16 %v724
        %v733 = vunpack.c.l.b16 %v725
        %v734 = vpack.c.b16 %v731, %v730
        %v735 = vpack.c.b16 %v733, %v732
        %738 = vmatprep.subr.bf16.mxu0 0
        %739 = vmatpush1.bf16.msra.mxu0 %v734
        %740 = vmatprep.subr.bf16.mxu0 0
        %741 = vmatpush1.bf16.msra.mxu0 %v735
        %742 = vmatprep.subr.bf16.mxu0 0
        %743 = vmatpush1.bf16.msra.mxu0 0
        %744 = vmatprep.subr.bf16.mxu0 0
        %745 = vmatpush1.bf16.msra.mxu0 0
        %746 = vmatprep.subr.bf16.mxu0 0
        %747 = vmatpush1.bf16.msra.mxu0 0
        %748 = vmatprep.subr.bf16.mxu0 0
        %749 = vmatpush1.bf16.msra.mxu0 0
        %750 = vmatprep.subr.bf16.mxu0 0
        %751 = vmatpush1.bf16.msra.mxu0 0
        %752 = vmatprep.subr.bf16.mxu0 0
        %753 = vmatpush1.bf16.msra.mxu0 0
        %754 = vmatprep.subr.bf16.mxu0 0
        %755 = vmatpush1.bf16.msra.mxu0 0
        %756 = vmatprep.subr.bf16.mxu0 0
        %757 = vmatpush1.bf16.msra.mxu0 0
        %758 = vmatprep.subr.bf16.mxu0 0
        %759 = vmatpush1.bf16.msra.mxu0 0
        %760 = vmatprep.subr.bf16.mxu0 0
        %761 = vmatpush1.bf16.msra.mxu0 0
        %762 = vmatprep.subr.bf16.mxu0 0
        %763 = vmatpush1.bf16.msra.mxu0 0
        %764 = vmatprep.subr.bf16.mxu0 0
        %765 = vmatpush1.bf16.msra.mxu0 0
        %766 = vmatprep.subr.bf16.mxu0 0
        %767 = vmatpush1.bf16.msra.mxu0 0
        %768 = vmatprep.subr.bf16.mxu0 0
        %769 = vmatpush1.bf16.msra.mxu0 0
        %770 = vmatprep.mubr.bf16.mxu0 0
        %771 = vmatmul.mubr.bf16.gmra.mrb[0].mxu0 %v618
        %v772 = vpop.f32.mrb[0].mxu0
        %v773 = vadd.f32 0.0, %v772
        %v774 = vpop.f32.mrb[0].mxu0
        %v775 = vpop.f32.mrb[0].mxu0
        %v776 = vpop.f32.mrb[0].mxu0
        %777 = vdwg.mxu0
        %v778 = vpack.c.bf16 %v773, %v773
        %s779 = scalar_lea.vmem [#allocation3], 4
        %780 = vst.msk [vmem:[%s779] sm:$0xf] %vm661, %v778
        %s781 = scalar_lea.vmem %s4, 16
        %v782 = vld [vmem:[%s781] sm:$0xf]
        %v783 = vld [vmem:[%s781 + $0x4] sm:$0xf]
        %v784 = vld [vmem:[%s781 + $0x8] sm:$0xf]
        %v785 = vld [vmem:[%s781 + $0xc] sm:$0xf]
        %v790 = vunpack.c.l.b16 %v782
        %v791 = vunpack.c.l.b16 %v783
        %v792 = vunpack.c.l.b16 %v784
        %v793 = vunpack.c.l.b16 %v785
        %v794 = vpack.c.b16 %v791, %v790
        %v795 = vpack.c.b16 %v793, %v792
        %798 = vmatprep.subr.bf16.mxu0 0
        %799 = vmatpush1.bf16.msra.mxu0 %v794
        %800 = vmatprep.subr.bf16.mxu0 0
        %801 = vmatpush1.bf16.msra.mxu0 %v795
        %802 = vmatprep.subr.bf16.mxu0 0
        %803 = vmatpush1.bf16.msra.mxu0 0
        %804 = vmatprep.subr.bf16.mxu0 0
        %805 = vmatpush1.bf16.msra.mxu0 0
        %806 = vmatprep.subr.bf16.mxu0 0
        %807 = vmatpush1.bf16.msra.mxu0 0
        %808 = vmatprep.subr.bf16.mxu0 0
        %809 = vmatpush1.bf16.msra.mxu0 0
        %810 = vmatprep.subr.bf16.mxu0 0
        %811 = vmatpush1.bf16.msra.mxu0 0
        %812 = vmatprep.subr.bf16.mxu0 0
        %813 = vmatpush1.bf16.msra.mxu0 0
        %814 = vmatprep.subr.bf16.mxu0 0
        %815 = vmatpush1.bf16.msra.mxu0 0
        %816 = vmatprep.subr.bf16.mxu0 0
        %817 = vmatpush1.bf16.msra.mxu0 0
        %818 = vmatprep.subr.bf16.mxu0 0
        %819 = vmatpush1.bf16.msra.mxu0 0
        %820 = vmatprep.subr.bf16.mxu0 0
        %821 = vmatpush1.bf16.msra.mxu0 0
        %822 = vmatprep.subr.bf16.mxu0 0
        %823 = vmatpush1.bf16.msra.mxu0 0
        %824 = vmatprep.subr.bf16.mxu0 0
        %825 = vmatpush1.bf16.msra.mxu0 0
        %826 = vmatprep.subr.bf16.mxu0 0
        %827 = vmatpush1.bf16.msra.mxu0 0
        %828 = vmatprep.subr.bf16.mxu0 0
        %829 = vmatpush1.bf16.msra.mxu0 0
        %830 = vmatprep.mubr.bf16.mxu0 0
        %831 = vmatmul.mubr.bf16.gmra.mrb[0].mxu0 %v618
        %v832 = vpop.f32.mrb[0].mxu0
        %v833 = vadd.f32 0.0, %v832
        %v834 = vpop.f32.mrb[0].mxu0
        %v835 = vpop.f32.mrb[0].mxu0
        %v836 = vpop.f32.mrb[0].mxu0
        %837 = vdwg.mxu0
        %v838 = vpack.c.bf16 %v833, %v833
        %s839 = scalar_lea.vmem [#allocation4], 4
        %840 = vst.msk [vmem:[%s839] sm:$0xf] %vm661, %v838
        %s841 = scalar_lea.vmem %s3, 32
        %v842 = vld [vmem:[%s841] sm:$0xf]
        %v843 = vld [vmem:[%s841 + $0x4] sm:$0xf]
        %v844 = vld [vmem:[%s841 + $0x8] sm:$0xf]
        %v845 = vld [vmem:[%s841 + $0xc] sm:$0xf]
        %v850 = vunpack.c.l.b16 %v842
        %v851 = vunpack.c.l.b16 %v843
        %v852 = vunpack.c.l.b16 %v844
        %v853 = vunpack.c.l.b16 %v845
        %v854 = vpack.c.b16 %v851, %v850
        %v855 = vpack.c.b16 %v853, %v852
        %858 = vmatprep.subr.bf16.mxu0 0
        %859 = vmatpush1.bf16.msra.mxu0 %v854
        %860 = vmatprep.subr.bf16.mxu0 0
        %861 = vmatpush1.bf16.msra.mxu0 %v855
        %862 = vmatprep.subr.bf16.mxu0 0
        %863 = vmatpush1.bf16.msra.mxu0 0
        %864 = vmatprep.subr.bf16.mxu0 0
        %865 = vmatpush1.bf16.msra.mxu0 0
        %866 = vmatprep.subr.bf16.mxu0 0
        %867 = vmatpush1.bf16.msra.mxu0 0
        %868 = vmatprep.subr.bf16.mxu0 0
        %869 = vmatpush1.bf16.msra.mxu0 0
        %870 = vmatprep.subr.bf16.mxu0 0
        %871 = vmatpush1.bf16.msra.mxu0 0
        %872 = vmatprep.subr.bf16.mxu0 0
        %873 = vmatpush1.bf16.msra.mxu0 0
        %874 = vmatprep.subr.bf16.mxu0 0
        %875 = vmatpush1.bf16.msra.mxu0 0
        %876 = vmatprep.subr.bf16.mxu0 0
        %877 = vmatpush1.bf16.msra.mxu0 0
        %878 = vmatprep.subr.bf16.mxu0 0
        %879 = vmatpush1.bf16.msra.mxu0 0
        %880 = vmatprep.subr.bf16.mxu0 0
        %881 = vmatpush1.bf16.msra.mxu0 0
        %882 = vmatprep.subr.bf16.mxu0 0
        %883 = vmatpush1.bf16.msra.mxu0 0
        %884 = vmatprep.subr.bf16.mxu0 0
        %885 = vmatpush1.bf16.msra.mxu0 0
        %886 = vmatprep.subr.bf16.mxu0 0
        %887 = vmatpush1.bf16.msra.mxu0 0
        %888 = vmatprep.subr.bf16.mxu0 0
        %889 = vmatpush1.bf16.msra.mxu0 0
        %890 = vmatprep.mubr.bf16.mxu0 0
        %891 = vmatmul.mubr.bf16.gmra.mrb[0].mxu0 %v618
        %v892 = vpop.f32.mrb[0].mxu0
        %v893 = vadd.f32 0.0, %v892
        %v894 = vpop.f32.mrb[0].mxu0
        %v895 = vpop.f32.mrb[0].mxu0
        %v896 = vpop.f32.mrb[0].mxu0
        %897 = vdwg.mxu0
        %v898 = vpack.c.bf16 %v893, %v893
        %s899 = scalar_lea.vmem [#allocation3], 8
        %900 = vst.msk [vmem:[%s899] sm:$0xf] %vm661, %v898
        %s901 = scalar_lea.vmem %s4, 32
        %v902 = vld [vmem:[%s901] sm:$0xf]
        %v903 = vld [vmem:[%s901 + $0x4] sm:$0xf]
        %v904 = vld [vmem:[%s901 + $0x8] sm:$0xf]
        %v905 = vld [vmem:[%s901 + $0xc] sm:$0xf]
        %v910 = vunpack.c.l.b16 %v902
        %v911 = vunpack.c.l.b16 %v903
        %v912 = vunpack.c.l.b16 %v904
        %v913 = vunpack.c.l.b16 %v905
        %v914 = vpack.c.b16 %v911, %v910
        %v915 = vpack.c.b16 %v913, %v912
        %918 = vmatprep.subr.bf16.mxu0 0
        %919 = vmatpush1.bf16.msra.mxu0 %v914
        %920 = vmatprep.subr.bf16.mxu0 0
        %921 = vmatpush1.bf16.msra.mxu0 %v915
        %922 = vmatprep.subr.bf16.mxu0 0
        %923 = vmatpush1.bf16.msra.mxu0 0
        %924 = vmatprep.subr.bf16.mxu0 0
        %925 = vmatpush1.bf16.msra.mxu0 0
        %926 = vmatprep.subr.bf16.mxu0 0
        %927 = vmatpush1.bf16.msra.mxu0 0
        %928 = vmatprep.subr.bf16.mxu0 0
        %929 = vmatpush1.bf16.msra.mxu0 0
        %930 = vmatprep.subr.bf16.mxu0 0
        %931 = vmatpush1.bf16.msra.mxu0 0
        %932 = vmatprep.subr.bf16.mxu0 0
        %933 = vmatpush1.bf16.msra.mxu0 0
        %934 = vmatprep.subr.bf16.mxu0 0
        %935 = vmatpush1.bf16.msra.mxu0 0
        %936 = vmatprep.subr.bf16.mxu0 0
        %937 = vmatpush1.bf16.msra.mxu0 0
        %938 = vmatprep.subr.bf16.mxu0 0
        %939 = vmatpush1.bf16.msra.mxu0 0
        %940 = vmatprep.subr.bf16.mxu0 0
        %941 = vmatpush1.bf16.msra.mxu0 0
        %942 = vmatprep.subr.bf16.mxu0 0
        %943 = vmatpush1.bf16.msra.mxu0 0
        %944 = vmatprep.subr.bf16.mxu0 0
        %945 = vmatpush1.bf16.msra.mxu0 0
        %946 = vmatprep.subr.bf16.mxu0 0
        %947 = vmatpush1.bf16.msra.mxu0 0
        %948 = vmatprep.subr.bf16.mxu0 0
        %949 = vmatpush1.bf16.msra.mxu0 0
        %950 = vmatprep.mubr.bf16.mxu0 0
        %951 = vmatmul.mubr.bf16.gmra.mrb[0].mxu0 %v618
        %v952 = vpop.f32.mrb[0].mxu0
        %v953 = vadd.f32 0.0, %v952
        %v954 = vpop.f32.mrb[0].mxu0
        %v955 = vpop.f32.mrb[0].mxu0
        %v956 = vpop.f32.mrb[0].mxu0
        %957 = vdwg.mxu0
        %v958 = vpack.c.bf16 %v953, %v953
        %s959 = scalar_lea.vmem [#allocation4], 8
        %960 = vst.msk [vmem:[%s959] sm:$0xf] %vm661, %v958
        %s961 = scalar_lea.vmem %s3, 48
        %v962 = vld [vmem:[%s961] sm:$0xf]
        %v963 = vld [vmem:[%s961 + $0x4] sm:$0xf]
        %v964 = vld [vmem:[%s961 + $0x8] sm:$0xf]
        %v965 = vld [vmem:[%s961 + $0xc] sm:$0xf]
        %v970 = vunpack.c.l.b16 %v962
        %v971 = vunpack.c.l.b16 %v963
        %v972 = vunpack.c.l.b16 %v964
        %v973 = vunpack.c.l.b16 %v965
        %v974 = vpack.c.b16 %v971, %v970
        %v975 = vpack.c.b16 %v973, %v972
        %978 = vmatprep.subr.bf16.mxu0 0
        %979 = vmatpush1.bf16.msra.mxu0 %v974
        %980 = vmatprep.subr.bf16.mxu0 0
        %981 = vmatpush1.bf16.msra.mxu0 %v975
        %982 = vmatprep.subr.bf16.mxu0 0
        %983 = vmatpush1.bf16.msra.mxu0 0
        %984 = vmatprep.subr.bf16.mxu0 0
        %985 = vmatpush1.bf16.msra.mxu0 0
        %986 = vmatprep.subr.bf16.mxu0 0
        %987 = vmatpush1.bf16.msra.mxu0 0
        %988 = vmatprep.subr.bf16.mxu0 0
        %989 = vmatpush1.bf16.msra.mxu0 0
        %990 = vmatprep.subr.bf16.mxu0 0
        %991 = vmatpush1.bf16.msra.mxu0 0
        %992 = vmatprep.subr.bf16.mxu0 0
        %993 = vmatpush1.bf16.msra.mxu0 0
        %994 = vmatprep.subr.bf16.mxu0 0
        %995 = vmatpush1.bf16.msra.mxu0 0
        %996 = vmatprep.subr.bf16.mxu0 0
        %997 = vmatpush1.bf16.msra.mxu0 0
        %998 = vmatprep.subr.bf16.mxu0 0
        %999 = vmatpush1.bf16.msra.mxu0 0
        %1000 = vmatprep.subr.bf16.mxu0 0
        %1001 = vmatpush1.bf16.msra.mxu0 0
        %1002 = vmatprep.subr.bf16.mxu0 0
        %1003 = vmatpush1.bf16.msra.mxu0 0
        %1004 = vmatprep.subr.bf16.mxu0 0
        %1005 = vmatpush1.bf16.msra.mxu0 0
        %1006 = vmatprep.subr.bf16.mxu0 0
        %1007 = vmatpush1.bf16.msra.mxu0 0
        %1008 = vmatprep.subr.bf16.mxu0 0
        %1009 = vmatpush1.bf16.msra.mxu0 0
        %1010 = vmatprep.mubr.bf16.mxu0 0
        %1011 = vmatmul.mubr.bf16.gmra.mrb[0].mxu0 %v618
        %v1012 = vpop.f32.mrb[0].mxu0
        %v1013 = vadd.f32 0.0, %v1012
        %v1014 = vpop.f32.mrb[0].mxu0
        %v1015 = vpop.f32.mrb[0].mxu0
        %v1016 = vpop.f32.mrb[0].mxu0
        %1017 = vdwg.mxu0
        %v1018 = vpack.c.bf16 %v1013, %v1013
        %s1019 = scalar_lea.vmem [#allocation3], 12
        %1020 = vst.msk [vmem:[%s1019] sm:$0xf] %vm661, %v1018
        %s1021 = scalar_lea.vmem %s4, 48
        %v1022 = vld [vmem:[%s1021] sm:$0xf]
        %v1023 = vld [vmem:[%s1021 + $0x4] sm:$0xf]
        %v1024 = vld [vmem:[%s1021 + $0x8] sm:$0xf]
        %v1025 = vld [vmem:[%s1021 + $0xc] sm:$0xf]
        %v1030 = vunpack.c.l.b16 %v1022
        %v1031 = vunpack.c.l.b16 %v1023
        %v1032 = vunpack.c.l.b16 %v1024
        %v1033 = vunpack.c.l.b16 %v1025
        %v1034 = vpack.c.b16 %v1031, %v1030
        %v1035 = vpack.c.b16 %v1033, %v1032
        %1038 = vmatprep.subr.bf16.mxu0 0
        %1039 = vmatpush1.bf16.msra.mxu0 %v1034
        %1040 = vmatprep.subr.bf16.mxu0 0
        %1041 = vmatpush1.bf16.msra.mxu0 %v1035
        %1042 = vmatprep.subr.bf16.mxu0 0
        %1043 = vmatpush1.bf16.msra.mxu0 0
        %1044 = vmatprep.subr.bf16.mxu0 0
        %1045 = vmatpush1.bf16.msra.mxu0 0
        %1046 = vmatprep.subr.bf16.mxu0 0
        %1047 = vmatpush1.bf16.msra.mxu0 0
        %1048 = vmatprep.subr.bf16.mxu0 0
        %1049 = vmatpush1.bf16.msra.mxu0 0
        %1050 = vmatprep.subr.bf16.mxu0 0
        %1051 = vmatpush1.bf16.msra.mxu0 0
        %1052 = vmatprep.subr.bf16.mxu0 0
        %1053 = vmatpush1.bf16.msra.mxu0 0
        %1054 = vmatprep.subr.bf16.mxu0 0
        %1055 = vmatpush1.bf16.msra.mxu0 0
        %1056 = vmatprep.subr.bf16.mxu0 0
        %1057 = vmatpush1.bf16.msra.mxu0 0
        %1058 = vmatprep.subr.bf16.mxu0 0
        %1059 = vmatpush1.bf16.msra.mxu0 0
        %1060 = vmatprep.subr.bf16.mxu0 0
        %1061 = vmatpush1.bf16.msra.mxu0 0
        %1062 = vmatprep.subr.bf16.mxu0 0
        %1063 = vmatpush1.bf16.msra.mxu0 0
        %1064 = vmatprep.subr.bf16.mxu0 0
        %1065 = vmatpush1.bf16.msra.mxu0 0
        %1066 = vmatprep.subr.bf16.mxu0 0
        %1067 = vmatpush1.bf16.msra.mxu0 0
        %1068 = vmatprep.subr.bf16.mxu0 0
        %1069 = vmatpush1.bf16.msra.mxu0 0
        %1070 = vmatprep.mubr.bf16.mxu0 0
        %1071 = vmatmul.mubr.bf16.gmra.mrb[0].mxu0 %v618
        %v1072 = vpop.f32.mrb[0].mxu0
        %v1073 = vadd.f32 0.0, %v1072
        %v1074 = vpop.f32.mrb[0].mxu0
        %v1075 = vpop.f32.mrb[0].mxu0
        %v1076 = vpop.f32.mrb[0].mxu0
        %1077 = vdwg.mxu0
        %v1078 = vpack.c.bf16 %v1073, %v1073
        %s1079 = scalar_lea.vmem [#allocation4], 12
        %1080 = vst.msk [vmem:[%s1079] sm:$0xf] %vm661, %v1078
        %v1081 = vld [vmem:[#allocation2] sm:$0xf]
        %v1082 = vld [vmem:[#allocation2 + $0x4] sm:$0xf]
        %v1083 = vld [vmem:[#allocation2 + $0x8] sm:$0xf]
        %v1084 = vld [vmem:[#allocation2 + $0xc] sm:$0xf]
        %v1085 = vld [vmem:[#allocation3] sm:$0xf]
        %v1086 = vld [vmem:[#allocation3 + $0x4] sm:$0xf]
        %v1087 = vld [vmem:[#allocation3 + $0x8] sm:$0xf]
        %v1088 = vld [vmem:[#allocation3 + $0xc] sm:$0xf]
        %v1089 = vld [vmem:[#allocation4] sm:$0xf]
        %v1090 = vld [vmem:[#allocation4 + $0x4] sm:$0xf]
        %v1091 = vld [vmem:[#allocation4 + $0x8] sm:$0xf]
        %v1092 = vld [vmem:[#allocation4 + $0xc] sm:$0xf]
        %vm1093 = vcmask 130048
        %v1095 = vsel %vm1093, %v1081, 0
        %v1098 = vsel %vm1093, %v1085, 0
        %1100 = vmatprep.subr.bf16.mxu0 0
        %1101 = vmatpush1.bf16.xpose.msra.mxu0 %v1098
        %1102 = vmatprep.subr.bf16.mxu0 0
        %1103 = vmatpush1.bf16.xpose.msra.mxu0 0
        %1104 = vmatprep.subr.bf16.mxu0 0
        %1105 = vmatpush1.bf16.xpose.msra.mxu0 0
        %1106 = vmatprep.subr.bf16.mxu0 0
        %1107 = vmatpush1.bf16.xpose.msra.mxu0 0
        %1108 = vmatprep.subr.bf16.mxu0 0
        %1109 = vmatpush1.bf16.xpose.msra.mxu0 0
        %1110 = vmatprep.subr.bf16.mxu0 0
        %1111 = vmatpush1.bf16.xpose.msra.mxu0 0
        %1112 = vmatprep.subr.bf16.mxu0 0
        %1113 = vmatpush1.bf16.xpose.msra.mxu0 0
        %1114 = vmatprep.subr.bf16.mxu0 0
        %1115 = vmatpush1.bf16.xpose.msra.mxu0 0
        %1116 = vmatprep.subr.bf16.mxu0 0
        %1117 = vmatpush1.bf16.xpose.msra.mxu0 0
        %1118 = vmatprep.subr.bf16.mxu0 0
        %1119 = vmatpush1.bf16.xpose.msra.mxu0 0
        %1120 = vmatprep.subr.bf16.mxu0 0
        %1121 = vmatpush1.bf16.xpose.msra.mxu0 0
        %1122 = vmatprep.subr.bf16.mxu0 0
        %1123 = vmatpush1.bf16.xpose.msra.mxu0 0
        %1124 = vmatprep.subr.bf16.mxu0 0
        %1125 = vmatpush1.bf16.xpose.msra.mxu0 0
        %1126 = vmatprep.subr.bf16.mxu0 0
        %1127 = vmatpush1.bf16.xpose.msra.mxu0 0
        %1128 = vmatprep.subr.bf16.mxu0 0
        %1129 = vmatpush1.bf16.xpose.msra.mxu0 0
        %1130 = vmatprep.subr.bf16.mxu0 0
        %1131 = vmatpush1.bf16.xpose.msra.mxu0 0
        %1132 = vmatprep.mubr.bf16.mxu0 0
        %1133 = vmatmul.mubr.bf16.gmra.mrb[0].mxu0 %v1095
        %v1134 = vpop.f32.mrb[0].mxu0
        %v1135 = vadd.f32 0.0, %v1134
        %v1136 = vpop.f32.mrb[0].mxu0
        %v1137 = vpop.f32.mrb[0].mxu0
        %v1138 = vpop.f32.mrb[0].mxu0
        %1139 = vdwg.mxu0
        %v1141 = vsel %vm1093, %v1082, 0
        %v1144 = vsel %vm1093, %v1086, 0
        %1146 = vmatprep.subr.bf16.mxu0 0
        %1147 = vmatpush1.bf16.xpose.msra.mxu0 %v1144
        %1148 = vmatprep.subr.bf16.mxu0 0
        %1149 = vmatpush1.bf16.xpose.msra.mxu0 0
        %1150 = vmatprep.subr.bf16.mxu0 0
        %1151 = vmatpush1.bf16.xpose.msra.mxu0 0
        %1152 = vmatprep.subr.bf16.mxu0 0
        %1153 = vmatpush1.bf16.xpose.msra.mxu0 0
        %1154 = vmatprep.subr.bf16.mxu0 0
        %1155 = vmatpush1.bf16.xpose.msra.mxu0 0
        %1156 = vmatprep.subr.bf16.mxu0 0
        %1157 = vmatpush1.bf16.xpose.msra.mxu0 0
        %1158 = vmatprep.subr.bf16.mxu0 0
        %1159 = vmatpush1.bf16.xpose.msra.mxu0 0
        %1160 = vmatprep.subr.bf16.mxu0 0
        %1161 = vmatpush1.bf16.xpose.msra.mxu0 0
        %1162 = vmatprep.subr.bf16.mxu0 0
        %1163 = vmatpush1.bf16.xpose.msra.mxu0 0
        %1164 = vmatprep.subr.bf16.mxu0 0
        %1165 = vmatpush1.bf16.xpose.msra.mxu0 0
        %1166 = vmatprep.subr.bf16.mxu0 0
        %1167 = vmatpush1.bf16.xpose.msra.mxu0 0
        %1168 = vmatprep.subr.bf16.mxu0 0
        %1169 = vmatpush1.bf16.xpose.msra.mxu0 0
        %1170 = vmatprep.subr.bf16.mxu0 0
        %1171 = vmatpush1.bf16.xpose.msra.mxu0 0
        %1172 = vmatprep.subr.bf16.mxu0 0
        %1173 = vmatpush1.bf16.xpose.msra.mxu0 0
        %1174 = vmatprep.subr.bf16.mxu0 0
        %1175 = vmatpush1.bf16.xpose.msra.mxu0 0
        %1176 = vmatprep.subr.bf16.mxu0 0
        %1177 = vmatpush1.bf16.xpose.msra.mxu0 0
        %1178 = vmatprep.mubr.bf16.mxu0 0
        %1179 = vmatmul.mubr.bf16.gmra.mrb[0].mxu0 %v1141
        %v1180 = vpop.f32.mrb[0].mxu0
        %v1181 = vadd.f32 0.0, %v1180
        %v1182 = vpop.f32.mrb[0].mxu0
        %v1183 = vpop.f32.mrb[0].mxu0
        %v1184 = vpop.f32.mrb[0].mxu0
        %1185 = vdwg.mxu0
        %v1187 = vsel %vm1093, %v1083, 0
        %v1190 = vsel %vm1093, %v1087, 0
        %1192 = vmatprep.subr.bf16.mxu0 0
        %1193 = vmatpush1.bf16.xpose.msra.mxu0 %v1190
        %1194 = vmatprep.subr.bf16.mxu0 0
        %1195 = vmatpush1.bf16.xpose.msra.mxu0 0
        %1196 = vmatprep.subr.bf16.mxu0 0
        %1197 = vmatpush1.bf16.xpose.msra.mxu0 0
        %1198 = vmatprep.subr.bf16.mxu0 0
        %1199 = vmatpush1.bf16.xpose.msra.mxu0 0
        %1200 = vmatprep.subr.bf16.mxu0 0
        %1201 = vmatpush1.bf16.xpose.msra.mxu0 0
        %1202 = vmatprep.subr.bf16.mxu0 0
        %1203 = vmatpush1.bf16.xpose.msra.mxu0 0
        %1204 = vmatprep.subr.bf16.mxu0 0
        %1205 = vmatpush1.bf16.xpose.msra.mxu0 0
        %1206 = vmatprep.subr.bf16.mxu0 0
        %1207 = vmatpush1.bf16.xpose.msra.mxu0 0
        %1208 = vmatprep.subr.bf16.mxu0 0
        %1209 = vmatpush1.bf16.xpose.msra.mxu0 0
        %1210 = vmatprep.subr.bf16.mxu0 0
        %1211 = vmatpush1.bf16.xpose.msra.mxu0 0
        %1212 = vmatprep.subr.bf16.mxu0 0
        %1213 = vmatpush1.bf16.xpose.msra.mxu0 0
        %1214 = vmatprep.subr.bf16.mxu0 0
        %1215 = vmatpush1.bf16.xpose.msra.mxu0 0
        %1216 = vmatprep.subr.bf16.mxu0 0
        %1217 = vmatpush1.bf16.xpose.msra.mxu0 0
        %1218 = vmatprep.subr.bf16.mxu0 0
        %1219 = vmatpush1.bf16.xpose.msra.mxu0 0
        %1220 = vmatprep.subr.bf16.mxu0 0
        %1221 = vmatpush1.bf16.xpose.msra.mxu0 0
        %1222 = vmatprep.subr.bf16.mxu0 0
        %1223 = vmatpush1.bf16.xpose.msra.mxu0 0
        %1224 = vmatprep.mubr.bf16.mxu0 0
        %1225 = vmatmul.mubr.bf16.gmra.mrb[0].mxu0 %v1187
        %v1226 = vpop.f32.mrb[0].mxu0
        %v1227 = vadd.f32 0.0, %v1226
        %v1228 = vpop.f32.mrb[0].mxu0
        %v1229 = vpop.f32.mrb[0].mxu0
        %v1230 = vpop.f32.mrb[0].mxu0
        %1231 = vdwg.mxu0
        %v1233 = vsel %vm1093, %v1084, 0
        %v1236 = vsel %vm1093, %v1088, 0
        %1238 = vmatprep.subr.bf16.mxu0 0
        %1239 = vmatpush1.bf16.xpose.msra.mxu0 %v1236
        %1240 = vmatprep.subr.bf16.mxu0 0
        %1241 = vmatpush1.bf16.xpose.msra.mxu0 0
        %1242 = vmatprep.subr.bf16.mxu0 0
        %1243 = vmatpush1.bf16.xpose.msra.mxu0 0
        %1244 = vmatprep.subr.bf16.mxu0 0
        %1245 = vmatpush1.bf16.xpose.msra.mxu0 0
        %1246 = vmatprep.subr.bf16.mxu0 0
        %1247 = vmatpush1.bf16.xpose.msra.mxu0 0
        %1248 = vmatprep.subr.bf16.mxu0 0
        %1249 = vmatpush1.bf16.xpose.msra.mxu0 0
        %1250 = vmatprep.subr.bf16.mxu0 0
        %1251 = vmatpush1.bf16.xpose.msra.mxu0 0
        %1252 = vmatprep.subr.bf16.mxu0 0
        %1253 = vmatpush1.bf16.xpose.msra.mxu0 0
        %1254 = vmatprep.subr.bf16.mxu0 0
        %1255 = vmatpush1.bf16.xpose.msra.mxu0 0
        %1256 = vmatprep.subr.bf16.mxu0 0
        %1257 = vmatpush1.bf16.xpose.msra.mxu0 0
        %1258 = vmatprep.subr.bf16.mxu0 0
        %1259 = vmatpush1.bf16.xpose.msra.mxu0 0
        %1260 = vmatprep.subr.bf16.mxu0 0
        %1261 = vmatpush1.bf16.xpose.msra.mxu0 0
        %1262 = vmatprep.subr.bf16.mxu0 0
        %1263 = vmatpush1.bf16.xpose.msra.mxu0 0
        %1264 = vmatprep.subr.bf16.mxu0 0
        %1265 = vmatpush1.bf16.xpose.msra.mxu0 0
        %1266 = vmatprep.subr.bf16.mxu0 0
        %1267 = vmatpush1.bf16.xpose.msra.mxu0 0
        %1268 = vmatprep.subr.bf16.mxu0 0
        %1269 = vmatpush1.bf16.xpose.msra.mxu0 0
        %1270 = vmatprep.mubr.bf16.mxu0 0
        %1271 = vmatmul.mubr.bf16.gmra.mrb[0].mxu0 %v1233
        %v1272 = vpop.f32.mrb[0].mxu0
        %v1273 = vadd.f32 0.0, %v1272
        %v1274 = vpop.f32.mrb[0].mxu0
        %v1275 = vpop.f32.mrb[0].mxu0
        %v1276 = vpop.f32.mrb[0].mxu0
        %1277 = vdwg.mxu0
        %v1278 = vld [vmem:[#allocation5] sm:$0xff]
        %v1279 = vld [vmem:[#allocation5 + $0x8] sm:$0xff]
        %v1280 = vld [vmem:[#allocation5 + $0x10] sm:$0xff]
        %v1281 = vld [vmem:[#allocation5 + $0x18] sm:$0xff]
        %vm1282 = vcmask 64512
        %v1283 = vsel %vm1282, %v1135, -inf
        %1284 = vmax.xlane.f32.xlu0 %v1283
        %v1285 = vpop.xlane.xlu0 %1284
        %v1286 = vsel %vm1282, %v1181, -inf
        %1287 = vmax.xlane.f32.xlu0 %v1286
        %v1288 = vpop.xlane.xlu0 %1287
        %v1289 = vsel %vm1282, %v1227, -inf
        %1290 = vmax.xlane.f32.xlu0 %v1289
        %v1291 = vpop.xlane.xlu0 %1290
        %v1292 = vsel %vm1282, %v1273, -inf
        %1293 = vmax.xlane.f32.xlu0 %v1292
        %v1294 = vpop.xlane.xlu0 %1293
        %v1295 = vmax.f32 %v1278, %v1285
        %v1296 = vmax.f32 %v1279, %v1288
        %v1297 = vmax.f32 %v1280, %v1291
        %v1298 = vmax.f32 %v1281, %v1294
        %v1299 = vsub.f32 %v1278, %v1295
        %v1300 = vsub.f32 %v1279, %v1296
        %v1301 = vsub.f32 %v1280, %v1297
        %v1302 = vsub.f32 %v1281, %v1298
        %v1303 = vmul.f32 %v1299, 1.442695
        %v1304 = vpow.pop %v1303
        %v1305 = vmul.f32 %v1300, 1.442695
        %v1306 = vpow.pop %v1305
        %v1307 = vmul.f32 %v1301, 1.442695
        %v1308 = vpow.pop %v1307
        %v1309 = vmul.f32 %v1302, 1.442695
        %v1310 = vpow.pop %v1309
        %1312 = vset.pattern.permute.xlu0 0
        %1313 = vperm.xlu0 %1312, %v1295
        %v1314 = vpop.permute.xlu0 %1313
        %1317 = vset.pattern.permute.xlu0 0
        %1318 = vperm.xlu0 %1317, %v1296
        %v1319 = vpop.permute.xlu0 %1318
        %1322 = vset.pattern.permute.xlu0 0
        %1323 = vperm.xlu0 %1322, %v1297
        %v1324 = vpop.permute.xlu0 %1323
        %1327 = vset.pattern.permute.xlu0 0
        %1328 = vperm.xlu0 %1327, %v1298
        %v1329 = vpop.permute.xlu0 %1328
        %v1331 = vsub.f32 %v1135, %v1314
        %v1332 = vsub.f32 %v1181, %v1319
        %v1333 = vsub.f32 %v1227, %v1324
        %v1334 = vsub.f32 %v1273, %v1329
        %v1335 = vmul.f32 %v1331, 1.442695
        %v1336 = vpow.pop %v1335
        %v1337 = vmul.f32 %v1332, 1.442695
        %v1338 = vpow.pop %v1337
        %v1339 = vmul.f32 %v1333, 1.442695
        %v1340 = vpow.pop %v1339
        %v1341 = vmul.f32 %v1334, 1.442695
        %v1342 = vpow.pop %v1341
        %v1343 = vld [vmem:[#allocation6] sm:$0xff]
        %v1344 = vld [vmem:[#allocation6 + $0x8] sm:$0xff]
        %v1345 = vld [vmem:[#allocation6 + $0x10] sm:$0xff]
        %v1346 = vld [vmem:[#allocation6 + $0x18] sm:$0xff]
        %v1347 = vmul.f32 %v1304, %v1343
        %v1348 = vmul.f32 %v1306, %v1344
        %v1349 = vmul.f32 %v1308, %v1345
        %v1350 = vmul.f32 %v1310, %v1346
        %v1351 = vsel %vm1282, %v1336, 0.0
        %1352 = vadd.xlane.f32.xlu0 %v1351
        %v1353 = vpop.xlane.xlu0 %1352
        %v1354 = vsel %vm1282, %v1338, 0.0
        %1355 = vadd.xlane.f32.xlu0 %v1354
        %v1356 = vpop.xlane.xlu0 %1355
        %v1357 = vsel %vm1282, %v1340, 0.0
        %1358 = vadd.xlane.f32.xlu0 %v1357
        %v1359 = vpop.xlane.xlu0 %1358
        %v1360 = vsel %vm1282, %v1342, 0.0
        %1361 = vadd.xlane.f32.xlu0 %v1360
        %v1362 = vpop.xlane.xlu0 %1361
        %v1363 = vadd.f32 %v1347, %v1353
        %v1364 = vadd.f32 %v1348, %v1356
        %v1365 = vadd.f32 %v1349, %v1359
        %v1366 = vadd.f32 %v1350, %v1362
        %vm1367 = vcmask 7168
        %1368 = vst.msk [vmem:[#allocation6] sm:$0xff] %vm1367, %v1363
        %1369 = vst.msk [vmem:[#allocation6 + $0x8] sm:$0xff] %vm1367, %v1364
        %1370 = vst.msk [vmem:[#allocation6 + $0x10] sm:$0xff] %vm1367, %v1365
        %1371 = vst.msk [vmem:[#allocation6 + $0x18] sm:$0xff] %vm1367, %v1366
        %v1372 = vld [vmem:[#allocation7] sm:$0xff]
        %v1373 = vld [vmem:[#allocation7 + $0x8] sm:$0xff]
        %v1374 = vld [vmem:[#allocation7 + $0x10] sm:$0xff]
        %v1375 = vld [vmem:[#allocation7 + $0x18] sm:$0xff]
        %1377 = vset.pattern.permute.xlu0 0
        %1378 = vperm.xlu0 %1377, %v1304
        %v1379 = vpop.permute.xlu0 %1378
        %1382 = vset.pattern.permute.xlu0 0
        %1383 = vperm.xlu0 %1382, %v1306
        %v1384 = vpop.permute.xlu0 %1383
        %1387 = vset.pattern.permute.xlu0 0
        %1388 = vperm.xlu0 %1387, %v1308
        %v1389 = vpop.permute.xlu0 %1388
        %1392 = vset.pattern.permute.xlu0 0
        %1393 = vperm.xlu0 %1392, %v1310
        %v1394 = vpop.permute.xlu0 %1393
        %v1396 = vmul.f32 %v1379, %v1372
        %v1397 = vmul.f32 %v1384, %v1373
        %v1398 = vmul.f32 %v1389, %v1374
        %v1399 = vmul.f32 %v1394, %v1375
        %v1400 = vpack.c.bf16 %v1336, %v1336
        %v1401 = vpack.c.bf16 %v1338, %v1338
        %v1402 = vpack.c.bf16 %v1340, %v1340
        %v1403 = vpack.c.bf16 %v1342, %v1342
        %v1405 = vsel %vm1282, %v1400, 0
        %vm1407 = vcmask 1043456
        %v1409 = vsel %vm1407, %v1089, 0
        %1411 = vmatprep.subr.bf16.mxu0 0
        %1412 = vmatpush1.bf16.msra.mxu0 %v1409
        %1413 = vmatprep.subr.bf16.mxu0 0
        %1414 = vmatpush1.bf16.msra.mxu0 0
        %1415 = vmatprep.subr.bf16.mxu0 0
        %1416 = vmatpush1.bf16.msra.mxu0 0
        %1417 = vmatprep.subr.bf16.mxu0 0
        %1418 = vmatpush1.bf16.msra.mxu0 0
        %1419 = vmatprep.subr.bf16.mxu0 0
        %1420 = vmatpush1.bf16.msra.mxu0 0
        %1421 = vmatprep.subr.bf16.mxu0 0
        %1422 = vmatpush1.bf16.msra.mxu0 0
        %1423 = vmatprep.subr.bf16.mxu0 0
        %1424 = vmatpush1.bf16.msra.mxu0 0
        %1425 = vmatprep.subr.bf16.mxu0 0
        %1426 = vmatpush1.bf16.msra.mxu0 0
        %1427 = vmatprep.subr.bf16.mxu0 0
        %1428 = vmatpush1.bf16.msra.mxu0 0
        %1429 = vmatprep.subr.bf16.mxu0 0
        %1430 = vmatpush1.bf16.msra.mxu0 0
        %1431 = vmatprep.subr.bf16.mxu0 0
        %1432 = vmatpush1.bf16.msra.mxu0 0
        %1433 = vmatprep.subr.bf16.mxu0 0
        %1434 = vmatpush1.bf16.msra.mxu0 0
        %1435 = vmatprep.subr.bf16.mxu0 0
        %1436 = vmatpush1.bf16.msra.mxu0 0
        %1437 = vmatprep.subr.bf16.mxu0 0
        %1438 = vmatpush1.bf16.msra.mxu0 0
        %1439 = vmatprep.subr.bf16.mxu0 0
        %1440 = vmatpush1.bf16.msra.mxu0 0
        %1441 = vmatprep.subr.bf16.mxu0 0
        %1442 = vmatpush1.bf16.msra.mxu0 0
        %1443 = vmatprep.mubr.bf16.mxu0 0
        %1444 = vmatmul.mubr.bf16.gmra.mrb[0].mxu0 %v1405
        %v1445 = vpop.f32.mrb[0].mxu0
        %v1446 = vadd.f32 0.0, %v1445
        %v1447 = vpop.f32.mrb[0].mxu0
        %v1448 = vpop.f32.mrb[0].mxu0
        %v1449 = vpop.f32.mrb[0].mxu0
        %1450 = vdwg.mxu0
        %v1452 = vsel %vm1282, %v1401, 0
        %v1455 = vsel %vm1407, %v1090, 0
        %1457 = vmatprep.subr.bf16.mxu0 0
        %1458 = vmatpush1.bf16.msra.mxu0 %v1455
        %1459 = vmatprep.subr.bf16.mxu0 0
        %1460 = vmatpush1.bf16.msra.mxu0 0
        %1461 = vmatprep.subr.bf16.mxu0 0
        %1462 = vmatpush1.bf16.msra.mxu0 0
        %1463 = vmatprep.subr.bf16.mxu0 0
        %1464 = vmatpush1.bf16.msra.mxu0 0
        %1465 = vmatprep.subr.bf16.mxu0 0
        %1466 = vmatpush1.bf16.msra.mxu0 0
        %1467 = vmatprep.subr.bf16.mxu0 0
        %1468 = vmatpush1.bf16.msra.mxu0 0
        %1469 = vmatprep.subr.bf16.mxu0 0
        %1470 = vmatpush1.bf16.msra.mxu0 0
        %1471 = vmatprep.subr.bf16.mxu0 0
        %1472 = vmatpush1.bf16.msra.mxu0 0
        %1473 = vmatprep.subr.bf16.mxu0 0
        %1474 = vmatpush1.bf16.msra.mxu0 0
        %1475 = vmatprep.subr.bf16.mxu0 0
        %1476 = vmatpush1.bf16.msra.mxu0 0
        %1477 = vmatprep.subr.bf16.mxu0 0
        %1478 = vmatpush1.bf16.msra.mxu0 0
        %1479 = vmatprep.subr.bf16.mxu0 0
        %1480 = vmatpush1.bf16.msra.mxu0 0
        %1481 = vmatprep.subr.bf16.mxu0 0
        %1482 = vmatpush1.bf16.msra.mxu0 0
        %1483 = vmatprep.subr.bf16.mxu0 0
        %1484 = vmatpush1.bf16.msra.mxu0 0
        %1485 = vmatprep.subr.bf16.mxu0 0
        %1486 = vmatpush1.bf16.msra.mxu0 0
        %1487 = vmatprep.subr.bf16.mxu0 0
        %1488 = vmatpush1.bf16.msra.mxu0 0
        %1489 = vmatprep.mubr.bf16.mxu0 0
        %1490 = vmatmul.mubr.bf16.gmra.mrb[0].mxu0 %v1452
        %v1491 = vpop.f32.mrb[0].mxu0
        %v1492 = vadd.f32 0.0, %v1491
        %v1493 = vpop.f32.mrb[0].mxu0
        %v1494 = vpop.f32.mrb[0].mxu0
        %v1495 = vpop.f32.mrb[0].mxu0
        %1496 = vdwg.mxu0
        %v1498 = vsel %vm1282, %v1402, 0
        %v1501 = vsel %vm1407, %v1091, 0
        %1503 = vmatprep.subr.bf16.mxu0 0
        %1504 = vmatpush1.bf16.msra.mxu0 %v1501
        %1505 = vmatprep.subr.bf16.mxu0 0
        %1506 = vmatpush1.bf16.msra.mxu0 0
        %1507 = vmatprep.subr.bf16.mxu0 0
        %1508 = vmatpush1.bf16.msra.mxu0 0
        %1509 = vmatprep.subr.bf16.mxu0 0
        %1510 = vmatpush1.bf16.msra.mxu0 0
        %1511 = vmatprep.subr.bf16.mxu0 0
        %1512 = vmatpush1.bf16.msra.mxu0 0
        %1513 = vmatprep.subr.bf16.mxu0 0
        %1514 = vmatpush1.bf16.msra.mxu0 0
        %1515 = vmatprep.subr.bf16.mxu0 0
        %1516 = vmatpush1.bf16.msra.mxu0 0
        %1517 = vmatprep.subr.bf16.mxu0 0
        %1518 = vmatpush1.bf16.msra.mxu0 0
        %1519 = vmatprep.subr.bf16.mxu0 0
        %1520 = vmatpush1.bf16.msra.mxu0 0
        %1521 = vmatprep.subr.bf16.mxu0 0
        %1522 = vmatpush1.bf16.msra.mxu0 0
        %1523 = vmatprep.subr.bf16.mxu0 0
        %1524 = vmatpush1.bf16.msra.mxu0 0
        %1525 = vmatprep.subr.bf16.mxu0 0
        %1526 = vmatpush1.bf16.msra.mxu0 0
        %1527 = vmatprep.subr.bf16.mxu0 0
        %1528 = vmatpush1.bf16.msra.mxu0 0
        %1529 = vmatprep.subr.bf16.mxu0 0
        %1530 = vmatpush1.bf16.msra.mxu0 0
        %1531 = vmatprep.subr.bf16.mxu0 0
        %1532 = vmatpush1.bf16.msra.mxu0 0
        %1533 = vmatprep.subr.bf16.mxu0 0
        %1534 = vmatpush1.bf16.msra.mxu0 0
        %1535 = vmatprep.mubr.bf16.mxu0 0
        %1536 = vmatmul.mubr.bf16.gmra.mrb[0].mxu0 %v1498
        %v1537 = vpop.f32.mrb[0].mxu0
        %v1538 = vadd.f32 0.0, %v1537
        %v1539 = vpop.f32.mrb[0].mxu0
        %v1540 = vpop.f32.mrb[0].mxu0
        %v1541 = vpop.f32.mrb[0].mxu0
        %1542 = vdwg.mxu0
        %v1544 = vsel %vm1282, %v1403, 0
        %v1547 = vsel %vm1407, %v1092, 0
        %1549 = vmatprep.subr.bf16.mxu0 0
        %1550 = vmatpush1.bf16.msra.mxu0 %v1547
        %1551 = vmatprep.subr.bf16.mxu0 0
        %1552 = vmatpush1.bf16.msra.mxu0 0
        %1553 = vmatprep.subr.bf16.mxu0 0
        %1554 = vmatpush1.bf16.msra.mxu0 0
        %1555 = vmatprep.subr.bf16.mxu0 0
        %1556 = vmatpush1.bf16.msra.mxu0 0
        %1557 = vmatprep.subr.bf16.mxu0 0
        %1558 = vmatpush1.bf16.msra.mxu0 0
        %1559 = vmatprep.subr.bf16.mxu0 0
        %1560 = vmatpush1.bf16.msra.mxu0 0
        %1561 = vmatprep.subr.bf16.mxu0 0
        %1562 = vmatpush1.bf16.msra.mxu0 0
        %1563 = vmatprep.subr.bf16.mxu0 0
        %1564 = vmatpush1.bf16.msra.mxu0 0
        %1565 = vmatprep.subr.bf16.mxu0 0
        %1566 = vmatpush1.bf16.msra.mxu0 0
        %1567 = vmatprep.subr.bf16.mxu0 0
        %1568 = vmatpush1.bf16.msra.mxu0 0
        %1569 = vmatprep.subr.bf16.mxu0 0
        %1570 = vmatpush1.bf16.msra.mxu0 0
        %1571 = vmatprep.subr.bf16.mxu0 0
        %1572 = vmatpush1.bf16.msra.mxu0 0
        %1573 = vmatprep.subr.bf16.mxu0 0
        %1574 = vmatpush1.bf16.msra.mxu0 0
        %1575 = vmatprep.subr.bf16.mxu0 0
        %1576 = vmatpush1.bf16.msra.mxu0 0
        %1577 = vmatprep.subr.bf16.mxu0 0
        %1578 = vmatpush1.bf16.msra.mxu0 0
        %1579 = vmatprep.subr.bf16.mxu0 0
        %1580 = vmatpush1.bf16.msra.mxu0 0
        %1581 = vmatprep.mubr.bf16.mxu0 0
        %1582 = vmatmul.mubr.bf16.gmra.mrb[0].mxu0 %v1544
        %v1583 = vpop.f32.mrb[0].mxu0
        %v1584 = vadd.f32 0.0, %v1583
        %v1585 = vpop.f32.mrb[0].mxu0
        %v1586 = vpop.f32.mrb[0].mxu0
        %v1587 = vpop.f32.mrb[0].mxu0
        %1588 = vdwg.mxu0
        %v1589 = vadd.f32 %v1396, %v1446
        %v1590 = vadd.f32 %v1397, %v1492
        %v1591 = vadd.f32 %v1398, %v1538
        %v1592 = vadd.f32 %v1399, %v1584
        %1593 = vst.msk [vmem:[#allocation7] sm:$0xff] %vm1093, %v1589
        %1594 = vst.msk [vmem:[#allocation7 + $0x8] sm:$0xff] %vm1093, %v1590
        %1595 = vst.msk [vmem:[#allocation7 + $0x10] sm:$0xff] %vm1093, %v1591
        %1596 = vst.msk [vmem:[#allocation7 + $0x18] sm:$0xff] %vm1093, %v1592
        %1597 = vst.msk [vmem:[#allocation5] sm:$0xff] %vm1367, %v1295
        %1598 = vst.msk [vmem:[#allocation5 + $0x8] sm:$0xff] %vm1367, %v1296
        %1599 = vst.msk [vmem:[#allocation5 + $0x10] sm:$0xff] %vm1367, %v1297
        %1600 = vst.msk [vmem:[#allocation5 + $0x18] sm:$0xff] %vm1367, %v1298
        // Predicated region
        $region53: #{tpu_custom_call.1} parent=47 // pred_check
          %p1601 = pneg %p337
        $region54: #{tpu_custom_call.1} parent=47 // pred_check_branch
          %1603 = sbr.rel (%p1601) target = $region56
        $region55: #{tpu_custom_call.1} parent=47 // pred_region
          %v1604 = vld [vmem:[#allocation6] sm:$0xff]
          %v1605 = vld [vmem:[#allocation6 + $0x8] sm:$0xff]
          %v1606 = vld [vmem:[#allocation6 + $0x10] sm:$0xff]
          %v1607 = vld [vmem:[#allocation6 + $0x18] sm:$0xff]
          %v1608 = vrcp.pop %v1604
          %v1609 = vrcp.pop %v1605
          %v1610 = vrcp.pop %v1606
          %v1611 = vrcp.pop %v1607
          %v1612 = vld [vmem:[#allocation7] sm:$0xff]
          %v1613 = vld [vmem:[#allocation7 + $0x8] sm:$0xff]
          %v1614 = vld [vmem:[#allocation7 + $0x10] sm:$0xff]
          %v1615 = vld [vmem:[#allocation7 + $0x18] sm:$0xff]
          %1617 = vset.pattern.permute.xlu0 0
          %1618 = vperm.xlu0 %1617, %v1608
          %v1619 = vpop.permute.xlu0 %1618
          %1622 = vset.pattern.permute.xlu0 0
          %1623 = vperm.xlu0 %1622, %v1609
          %v1624 = vpop.permute.xlu0 %1623
          %1627 = vset.pattern.permute.xlu0 0
          %1628 = vperm.xlu0 %1627, %v1610
          %v1629 = vpop.permute.xlu0 %1628
          %1632 = vset.pattern.permute.xlu0 0
          %1633 = vperm.xlu0 %1632, %v1611
          %v1634 = vpop.permute.xlu0 %1633
          %v1636 = vmul.f32 %v1612, %v1619
          %v1637 = vmul.f32 %v1613, %v1624
          %v1638 = vmul.f32 %v1614, %v1629
          %v1639 = vmul.f32 %v1615, %v1634
          %v1640 = vpack.c.bf16 %v1636, %v1636
          %v1641 = vpack.c.bf16 %v1637, %v1637
          %v1642 = vpack.c.bf16 %v1638, %v1638
          %v1643 = vpack.c.bf16 %v1639, %v1639
          %v1644 = vld [vmem:[%s5] sm:$0xf]
          %v1645 = vld [vmem:[%s5 + $0x4] sm:$0xf]
          %s1646 = scalar_lea.vmem %s5, 8
          %v1647 = vld [vmem:[%s1646] sm:$0xf]
          %v1648 = vld [vmem:[%s1646 + $0x4] sm:$0xf]
          %v1651 = vunpack.c.l.b16 %v1647
          %v1652 = vunpack.c.l.b16 %v1648
          %v1653 = vpack.c.b16 %v1652, %v1651
          %v1656 = vsel %vm1093, %v1641, 0
          %1658 = vmatprep.subr.bf16.mxu0 0
          %1659 = vmatpush1.bf16.msra.mxu0 %v1653
          %1660 = vmatprep.subr.bf16.mxu0 0
          %1661 = vmatpush1.bf16.msra.mxu0 0
          %1662 = vmatprep.subr.bf16.mxu0 0
          %1663 = vmatpush1.bf16.msra.mxu0 0
          %1664 = vmatprep.subr.bf16.mxu0 0
          %1665 = vmatpush1.bf16.msra.mxu0 0
          %1666 = vmatprep.subr.bf16.mxu0 0
          %1667 = vmatpush1.bf16.msra.mxu0 0
          %1668 = vmatprep.subr.bf16.mxu0 0
          %1669 = vmatpush1.bf16.msra.mxu0 0
          %1670 = vmatprep.subr.bf16.mxu0 0
          %1671 = vmatpush1.bf16.msra.mxu0 0
          %1672 = vmatprep.subr.bf16.mxu0 0
          %1673 = vmatpush1.bf16.msra.mxu0 0
          %1674 = vmatprep.subr.bf16.mxu0 0
          %1675 = vmatpush1.bf16.msra.mxu0 0
          %1676 = vmatprep.subr.bf16.mxu0 0
          %1677 = vmatpush1.bf16.msra.mxu0 0
          %1678 = vmatprep.subr.bf16.mxu0 0
          %1679 = vmatpush1.bf16.msra.mxu0 0
          %1680 = vmatprep.subr.bf16.mxu0 0
          %1681 = vmatpush1.bf16.msra.mxu0 0
          %1682 = vmatprep.subr.bf16.mxu0 0
          %1683 = vmatpush1.bf16.msra.mxu0 0
          %1684 = vmatprep.subr.bf16.mxu0 0
          %1685 = vmatpush1.bf16.msra.mxu0 0
          %1686 = vmatprep.subr.bf16.mxu0 0
          %1687 = vmatpush1.bf16.msra.mxu0 0
          %1688 = vmatprep.subr.bf16.mxu0 0
          %1689 = vmatpush1.bf16.msra.mxu0 0
          %1690 = vmatprep.mubr.bf16.mxu0 0
          %1691 = vmatmul.mubr.bf16.gmra.mrb[0].mxu0 %v1656
          %v1692 = vpop.f32.mrb[0].mxu0
          %v1693 = vadd.f32 0.0, %v1692
          %v1694 = vpop.f32.mrb[0].mxu0
          %v1695 = vpop.f32.mrb[0].mxu0
          %v1696 = vpop.f32.mrb[0].mxu0
          %1697 = vdwg.mxu0
          %v1700 = vunpack.c.l.b16 %v1644
          %v1701 = vunpack.c.l.b16 %v1645
          %v1702 = vpack.c.b16 %v1701, %v1700
          %v1705 = vsel %vm1093, %v1640, 0
          %1707 = vmatprep.subr.bf16.mxu0 0
          %1708 = vmatpush1.bf16.msra.mxu0 %v1702
          %1709 = vmatprep.subr.bf16.mxu0 0
          %1710 = vmatpush1.bf16.msra.mxu0 0
          %1711 = vmatprep.subr.bf16.mxu0 0
          %1712 = vmatpush1.bf16.msra.mxu0 0
          %1713 = vmatprep.subr.bf16.mxu0 0
          %1714 = vmatpush1.bf16.msra.mxu0 0
          %1715 = vmatprep.subr.bf16.mxu0 0
          %1716 = vmatpush1.bf16.msra.mxu0 0
          %1717 = vmatprep.subr.bf16.mxu0 0
          %1718 = vmatpush1.bf16.msra.mxu0 0
          %1719 = vmatprep.subr.bf16.mxu0 0
          %1720 = vmatpush1.bf16.msra.mxu0 0
          %1721 = vmatprep.subr.bf16.mxu0 0
          %1722 = vmatpush1.bf16.msra.mxu0 0
          %1723 = vmatprep.subr.bf16.mxu0 0
          %1724 = vmatpush1.bf16.msra.mxu0 0
          %1725 = vmatprep.subr.bf16.mxu0 0
          %1726 = vmatpush1.bf16.msra.mxu0 0
          %1727 = vmatprep.subr.bf16.mxu0 0
          %1728 = vmatpush1.bf16.msra.mxu0 0
          %1729 = vmatprep.subr.bf16.mxu0 0
          %1730 = vmatpush1.bf16.msra.mxu0 0
          %1731 = vmatprep.subr.bf16.mxu0 0
          %1732 = vmatpush1.bf16.msra.mxu0 0
          %1733 = vmatprep.subr.bf16.mxu0 0
          %1734 = vmatpush1.bf16.msra.mxu0 0
          %1735 = vmatprep.subr.bf16.mxu0 0
          %1736 = vmatpush1.bf16.msra.mxu0 0
          %1737 = vmatprep.subr.bf16.mxu0 0
          %1738 = vmatpush1.bf16.msra.mxu0 0
          %1739 = vmatprep.mubr.bf16.mxu0 0
          %1740 = vmatmul.mubr.bf16.gmra.mrb[0].mxu0 %v1705
          %v1741 = vpop.f32.mrb[0].mxu0
          %v1742 = vadd.f32 %v1693, %v1741
          %v1743 = vpop.f32.mrb[0].mxu0
          %v1744 = vpop.f32.mrb[0].mxu0
          %v1745 = vpop.f32.mrb[0].mxu0
          %1746 = vdwg.mxu0
          %s1747 = scalar_lea.vmem %s5, 16
          %v1748 = vld [vmem:[%s1747] sm:$0xf]
          %v1749 = vld [vmem:[%s1747 + $0x4] sm:$0xf]
          %v1752 = vunpack.c.l.b16 %v1748
          %v1753 = vunpack.c.l.b16 %v1749
          %v1754 = vpack.c.b16 %v1753, %v1752
          %v1757 = vsel %vm1093, %v1642, 0
          %1759 = vmatprep.subr.bf16.mxu0 0
          %1760 = vmatpush1.bf16.msra.mxu0 %v1754
          %1761 = vmatprep.subr.bf16.mxu0 0
          %1762 = vmatpush1.bf16.msra.mxu0 0
          %1763 = vmatprep.subr.bf16.mxu0 0
          %1764 = vmatpush1.bf16.msra.mxu0 0
          %1765 = vmatprep.subr.bf16.mxu0 0
          %1766 = vmatpush1.bf16.msra.mxu0 0
          %1767 = vmatprep.subr.bf16.mxu0 0
          %1768 = vmatpush1.bf16.msra.mxu0 0
          %1769 = vmatprep.subr.bf16.mxu0 0
          %1770 = vmatpush1.bf16.msra.mxu0 0
          %1771 = vmatprep.subr.bf16.mxu0 0
          %1772 = vmatpush1.bf16.msra.mxu0 0
          %1773 = vmatprep.subr.bf16.mxu0 0
          %1774 = vmatpush1.bf16.msra.mxu0 0
          %1775 = vmatprep.subr.bf16.mxu0 0
          %1776 = vmatpush1.bf16.msra.mxu0 0
          %1777 = vmatprep.subr.bf16.mxu0 0
          %1778 = vmatpush1.bf16.msra.mxu0 0
          %1779 = vmatprep.subr.bf16.mxu0 0
          %1780 = vmatpush1.bf16.msra.mxu0 0
          %1781 = vmatprep.subr.bf16.mxu0 0
          %1782 = vmatpush1.bf16.msra.mxu0 0
          %1783 = vmatprep.subr.bf16.mxu0 0
          %1784 = vmatpush1.bf16.msra.mxu0 0
          %1785 = vmatprep.subr.bf16.mxu0 0
          %1786 = vmatpush1.bf16.msra.mxu0 0
          %1787 = vmatprep.subr.bf16.mxu0 0
          %1788 = vmatpush1.bf16.msra.mxu0 0
          %1789 = vmatprep.subr.bf16.mxu0 0
          %1790 = vmatpush1.bf16.msra.mxu0 0
          %1791 = vmatprep.mubr.bf16.mxu0 0
          %1792 = vmatmul.mubr.bf16.gmra.mrb[0].mxu0 %v1757
          %v1793 = vpop.f32.mrb[0].mxu0
          %v1794 = vadd.f32 0.0, %v1793
          %v1795 = vpop.f32.mrb[0].mxu0
          %v1796 = vpop.f32.mrb[0].mxu0
          %v1797 = vpop.f32.mrb[0].mxu0
          %1798 = vdwg.mxu0
          %v1799 = vadd.f32 %v1742, %v1794
          %s1800 = scalar_lea.vmem %s5, 24
          %v1801 = vld [vmem:[%s1800] sm:$0xf]
          %v1802 = vld [vmem:[%s1800 + $0x4] sm:$0xf]
          %v1805 = vunpack.c.l.b16 %v1801
          %v1806 = vunpack.c.l.b16 %v1802
          %v1807 = vpack.c.b16 %v1806, %v1805
          %v1810 = vsel %vm1093, %v1643, 0
          %1812 = vmatprep.subr.bf16.mxu0 0
          %1813 = vmatpush1.bf16.msra.mxu0 %v1807
          %1814 = vmatprep.subr.bf16.mxu0 0
          %1815 = vmatpush1.bf16.msra.mxu0 0
          %1816 = vmatprep.subr.bf16.mxu0 0
          %1817 = vmatpush1.bf16.msra.mxu0 0
          %1818 = vmatprep.subr.bf16.mxu0 0
          %1819 = vmatpush1.bf16.msra.mxu0 0
          %1820 = vmatprep.subr.bf16.mxu0 0
          %1821 = vmatpush1.bf16.msra.mxu0 0
          %1822 = vmatprep.subr.bf16.mxu0 0
          %1823 = vmatpush1.bf16.msra.mxu0 0
          %1824 = vmatprep.subr.bf16.mxu0 0
          %1825 = vmatpush1.bf16.msra.mxu0 0
          %1826 = vmatprep.subr.bf16.mxu0 0
          %1827 = vmatpush1.bf16.msra.mxu0 0
          %1828 = vmatprep.subr.bf16.mxu0 0
          %1829 = vmatpush1.bf16.msra.mxu0 0
          %1830 = vmatprep.subr.bf16.mxu0 0
          %1831 = vmatpush1.bf16.msra.mxu0 0
          %1832 = vmatprep.subr.bf16.mxu0 0
          %1833 = vmatpush1.bf16.msra.mxu0 0
          %1834 = vmatprep.subr.bf16.mxu0 0
          %1835 = vmatpush1.bf16.msra.mxu0 0
          %1836 = vmatprep.subr.bf16.mxu0 0
          %1837 = vmatpush1.bf16.msra.mxu0 0
          %1838 = vmatprep.subr.bf16.mxu0 0
          %1839 = vmatpush1.bf16.msra.mxu0 0
          %1840 = vmatprep.subr.bf16.mxu0 0
          %1841 = vmatpush1.bf16.msra.mxu0 0
          %1842 = vmatprep.subr.bf16.mxu0 0
          %1843 = vmatpush1.bf16.msra.mxu0 0
          %1844 = vmatprep.mubr.bf16.mxu0 0
          %1845 = vmatmul.mubr.bf16.gmra.mrb[0].mxu0 %v1810
          %v1846 = vpop.f32.mrb[0].mxu0
          %v1847 = vadd.f32 0.0, %v1846
          %v1848 = vpop.f32.mrb[0].mxu0
          %v1849 = vpop.f32.mrb[0].mxu0
          %v1850 = vpop.f32.mrb[0].mxu0
          %1851 = vdwg.mxu0
          %v1852 = vadd.f32 %v1799, %v1847
          %v1853 = vld [vmem:[%s6] sm:$0x1]
          %v1855 = vlaneseq
          %v1856 = vshrl.u32 %v1855, 7
          %v1857 = vsub.s32 0, %v1856
          %v1858 = vrot.slane %v1853, %v1857
          %v1860 = vadd.f32 %v1852, %v1858
          %1861 = vst.msk [vmem:[%s319] sm:$0xff] %vm616, %v1860
        $region56: #{tpu_custom_call.1} parent=47 // pred_fallthru
          _
        %s1862 = sand.u32 %s211, 1
        %s1863 = scalar_lea.sflag [#allocation9], %s1862
        %s1864 = sand.u32 %s211, 1
        %s1865 = smul.addr %s1864, 8
        %s1866 = scalar_lea.vmem [#allocation8], %s1865
        // Predicated region
        $region57: #{tpu_custom_call.1} parent=47 // pred_check
          %p1867 = pneg %p221
        $region58: #{tpu_custom_call.1} parent=47 // pred_check_branch
          %1869 = sbr.rel (%p1867) target = $region60
        $region59: #{tpu_custom_call.1} parent=47 // pred_region
          %s1871 = ssub.s32 128, 128
          %1872 = vsyncadd %s1863, %s1871
          %s1873 = sadd.s32 %s27, %s26
          %s1874 = smul.addr %s1873, 128
          %s1875 = scalar_lea.hbm %s7, %s1874
          %s1877 = sshll.u32 %s1866, 4
          %s1878 = int_to_ptr.vmem [resolvable:$true] %s1877
          %1880 = dma.vmem_to_hbm [thread:$0]  %s1878, 128, %s1875, %s1863
        $region60: #{tpu_custom_call.1} parent=47 // pred_fallthru
          _
      $region48: #{tpu_custom_call.1} parent=5 // pred_fallthru
        _
      %p1881 = scmp.le.s32.totalorder 2, %s16
      // Predicated region
      $region61: #{tpu_custom_call.1} parent=5 // pred_check
        %p1882 = pneg %p1881
      $region62: #{tpu_custom_call.1} parent=5 // pred_check_branch
        %1884 = sbr.rel (%p1882) target = $region64
      $region63: #{tpu_custom_call.1} parent=5 // pred_region
        %s1885 = ssub.s32 %s16, 2
        // Predicated region
        $region65: #{tpu_custom_call.1} parent=63 // pred_check
          %p1886 = pneg %p227
        $region66: #{tpu_custom_call.1} parent=63 // pred_check_branch
          %1888 = sbr.rel (%p1886) target = $region68
        $region67: #{tpu_custom_call.1} parent=63 // pred_region
          %s1889 = sand.u32 %s212, 1
          %s1890 = scalar_lea.sflag [#allocation9], %s1889
          %s1891 = sand.u32 %s212, 1
          %s1892 = smul.addr %s1891, 8
          %s1893 = scalar_lea.vmem [#allocation8], %s1892
          %1894 = dma.done %s1890, 128
        $region68: #{tpu_custom_call.1} parent=63 // pred_fallthru
          _
      $region64: #{tpu_custom_call.1} parent=5 // pred_fallthru
        _
    $region6: #{tpu_custom_call.1} parent=1 // loop_footer
      %s20 = sadd.s32 1, %s16
    $region7: #{tpu_custom_call.1} parent=1 // loop_footer_branch
      %15 = sbr.rel target = $region3
    $region8: #{tpu_custom_call.1} parent=1 // loop_exit
      _
    %1895 = vsyncpa [#allocation9], 1
    %s1896 = scalar_lea.sflag [#allocation9], 1
    %1897 = vsyncpa %s1896, 1

</llo_original>
